<compile_context>
chip_gen: v6e
topology: v6e:2x2x1
jax: 0.10.0
libtpu: 0.0.40
codegen_flags: <defaults>
</compile_context>

<pallas_src>
import functools

import jax
import jax.numpy as jnp
import numpy as np
from jax import lax
from jax.experimental import pallas as pl
from jax.experimental.pallas import tpu as pltpu


def _attention_time_kernel(x_ref, w_in_ref, wp_ref, bp_ref, o_ref, *,
                           num_heads, block_b, seq_len, dim):
    """One grid step: `block_b` batch elements, rows flattened to (block_b*seq_len, .).

    x_ref   : (rows, 3C) bf16  -- [Q | K | V] lane-concatenated
    w_in_ref: (3C, 3C)   bf16  -- block-diag(wq*scale, wk, wv)
    wp_ref  : (C, C)     f32   -- output projection weight
    bp_ref  : (1, C)     f32   -- output projection bias
    o_ref   : (rows, C)  input dtype
    """
    C = dim
    D = C // num_heads
    M = block_b * seq_len

    # Fused input projection: one big-M, K=3C MXU matmul (bf16 x bf16 with f32
    # accumulation).  The softmax scale is already folded into the q block.
    qkv = jnp.dot(x_ref[...], w_in_ref[...], preferred_element_type=jnp.float32)

    # Leading-dim splits (seq_len is a multiple of 8): sublane-aligned, free.
    q3 = qkv[:, 0 * C:1 * C].reshape(block_b, seq_len, C)
    k3 = qkv[:, 1 * C:2 * C].reshape(block_b, seq_len, C)
    v3 = qkv[:, 2 * C:3 * C].reshape(block_b, seq_len, C)

    acc = jnp.zeros((M, C), dtype=jnp.float32)
    # Static unroll over heads (num_heads is small).  Head-batched
    # two-batch-dim dot_generals would shave a few MXU pushes, but the
    # attention stage is not the bottleneck at these shapes and the
    # single-batch-dim form below lowers robustly.
    for h in range(num_heads):
        qh = q3[:, :, h * D:(h + 1) * D]              # (Bt, N, D)
        kh = k3[:, :, h * D:(h + 1) * D]
        vh = v3[:, :, h * D:(h + 1) * D]

        # scores[b, i, j] = sum_d q[b,i,d] * k[b,j,d]   (no explicit transpose)
        s = lax.dot_general(qh, kh, (((2,), (2,)), ((0,), (0,))),
                            preferred_element_type=jnp.float32)        # (Bt, N, N)
        s = s - jnp.max(s, axis=-1, keepdims=True)
        p = jnp.exp(s)
        # EUP approximate reciprocal: rows sum to 1 +/- ~1e-3 (fine for eval).
        p = p * pl.reciprocal(jnp.sum(p, axis=-1, keepdims=True), approx=True)
        # attn_drop: identity (p = 0.0 / eval mode)

        oh = lax.dot_general(p, vh, (((2,), (1,)), ((0,), (0,))),
                             preferred_element_type=jnp.float32)       # (Bt, N, D)
        # Fold the head concat into the output projection:
        #   out += head_out @ wp[h*D:(h+1)*D, :]
        acc = acc + jnp.dot(oh.reshape(M, D), wp_ref[h * D:(h + 1) * D, :],
                            preferred_element_type=jnp.float32)

    # proj_drop: identity (eval mode)
    # TODO(synk): lane-dense packed output (store (rows/4, 4C) with a
    # block-replicated wp) would make the writeback un-masked; left out until
    # the in-kernel (rows, C) -> (rows/4, 4C) retile is profiled.
    o_ref[...] = (acc + bp_ref[...]).astype(o_ref.dtype)


def _num_tensorcores():
    """TensorCores per chip for the grid policy (v7x / megacore chips: 2)."""
    try:
        dev = jax.devices()[0]
        if dev.platform != "tpu":
            return 1
        kind = str(getattr(dev, "device_kind", "")).lower()
        if ("v7" in kind) or ("v4" in kind) or ("v5p" in kind):
            return 2
    except Exception:
        pass
    return 1


def _pick_block_batch(B, N, C, num_cores):
    """Largest divisor Bt of B whose block fits a conservative VMEM budget.

    Per-row bytes: double-buffered bf16 input slab (2 * 3C * 2), double-buffered
    f32 output slab (2 * C * 4), plus in-kernel f32 temporaries
    (qkv + q/k/v views + acc ~ 7 * C * 4).  The budget keeps the whole pipeline
    comfortably under v7x's 64 MiB VMEM (v5e/v6e have 2x the headroom).
    """
    bytes_per_row = 2 * (3 * C * 2) + 2 * (C * 4) + 7 * (C * 4)
    vmem_budget = 20 * 1024 * 1024
    rows_cap = max(N, min(4096, vmem_budget // max(bytes_per_row, 1)))

    divisors = [d for d in range(1, B + 1) if B % d == 0]
    fitting = [d for d in divisors if d * N <= rows_cap] or [1]
    bt = max(fitting)

    # v5e/v6e (one TensorCore): the grid is a serial loop, so take the single
    # biggest block (fewest ~0.35us/step overheads).  Multi-core chips (v7x):
    # guarantee at least one grid step per core so both cores get work.
    if num_cores > 1 and B // bt < num_cores:
        for d in sorted(fitting, reverse=True):
            if B // d >= num_cores:
                bt = d
                break
    return bt


def attention_time(Q, K, V, wq, wk, wv, wp, bp, *, num_heads):
    B, N, C = Q.shape
    assert C % num_heads == 0
    assert N % 8 == 0, "seq length must be sublane (8) aligned for this kernel"
    scale = float((C // num_heads) ** (-0.5))

    Bt = _pick_block_batch(B, N, C, _num_tensorcores())
    assert B % Bt == 0
    grid = (B // Bt,)
    rows = Bt * N

    # Lane-concat Q|K|V and cast to bf16 in one XLA pass (the cast pass was
    # needed anyway, so the concat adds no extra HBM traffic): one lane-denser
    # (B*N, 3C) input slab per step instead of three C-lane slabs.
    X = jnp.concatenate([Q.reshape(B * N, C),
                         K.reshape(B * N, C),
                         V.reshape(B * N, C)], axis=-1).astype(jnp.bfloat16)

    # Fused block-diagonal input-projection weight; the softmax scale is folded
    # into the q block once, outside the hot loop.
    w_in = jnp.zeros((3 * C, 3 * C), jnp.float32)
    w_in = w_in.at[0 * C:1 * C, 0 * C:1 * C].set(wq * scale)
    w_in = w_in.at[1 * C:2 * C, 1 * C:2 * C].set(wk)
    w_in = w_in.at[2 * C:3 * C, 2 * C:3 * C].set(wv)
    w_in = w_in.astype(jnp.bfloat16)

    wp_f32 = wp.astype(jnp.float32)          # tiny; keep f32 for the final projection
    bp2 = bp.astype(jnp.float32).reshape(1, C)

    kernel = functools.partial(_attention_time_kernel, num_heads=num_heads,
                               block_b=Bt, seq_len=N, dim=C)

    x_spec = pl.BlockSpec((rows, 3 * C), lambda g: (g, 0))
    w_in_spec = pl.BlockSpec((3 * C, 3 * C), lambda g: (0, 0))
    wp_spec = pl.BlockSpec((C, C), lambda g: (0, 0))
    bp_spec = pl.BlockSpec((1, C), lambda g: (0, 0))
    out_spec = pl.BlockSpec((rows, C), lambda g: (g, 0))

    out2 = pl.pallas_call(
        kernel,
        out_shape=jax.ShapeDtypeStruct((B * N, C), Q.dtype),
        grid=grid,
        in_specs=[x_spec, w_in_spec, wp_spec, bp_spec],
        out_specs=out_spec,
        compiler_params=pltpu.CompilerParams(
            dimension_semantics=("parallel",),
            vmem_limit_bytes=32 * 1024 * 1024),
    )(X, w_in, wp_f32, bp2)
    return out2.reshape(B, N, C)


def attention_time_ref(Q, K, V, wq, wk, wv, wp, bp, *, num_heads):
    """Pure-JAX reference mirroring the PyTorch forward exactly (f32)."""
    B, N, C = Q.shape
    D = C // num_heads
    scale = D ** (-0.5)
    q = (Q @ wq).reshape(B, N, num_heads, D).transpose(0, 2, 1, 3)
    k = (K @ wk).reshape(B, N, num_heads, D).transpose(0, 2, 1, 3)
    v = (V @ wv).reshape(B, N, num_heads, D).transpose(0, 2, 1, 3)
    attn = jnp.einsum('bhnd,bhmd->bhnm', q, k) * scale
    attn = jax.nn.softmax(attn, axis=-1)
    x = jnp.einsum('bhnm,bhmd->bhnd', attn, v).transpose(0, 2, 1, 3).reshape(B, N, C)
    return x @ wp + bp


if __name__ == "__main__":
    # Small shapes consistent with the module: dim=C=32, num_heads=4 (head_dim=8).
    B, N, C, H = 2, 8, 32, 4

    key = jax.random.PRNGKey(0)
    kq, kk, kv, kwq, kwk, kwv, kwp, kbp = jax.random.split(key, 8)

    Q = jax.random.normal(kq, (B, N, C), dtype=jnp.float32)
    K = jax.random.normal(kk, (B, N, C), dtype=jnp.float32)
    V = jax.random.normal(kv, (B, N, C), dtype=jnp.float32)

    # Deterministic synthetic parameters (qkv_bias=False -> no q/k/v bias;
    # proj has a bias).  Stored as (in, out) so y = x @ W matches PyTorch.
    init = 0.05
    wq = init * jax.random.normal(kwq, (C, C), dtype=jnp.float32)
    wk = init * jax.random.normal(kwk, (C, C), dtype=jnp.float32)
    wv = init * jax.random.normal(kwv, (C, C), dtype=jnp.float32)
    wp = init * jax.random.normal(kwp, (C, C), dtype=jnp.float32)
    bp = init * jax.random.normal(kbp, (C,), dtype=jnp.float32)

    out = attention_time(Q, K, V, wq, wk, wv, wp, bp, num_heads=H)
    out = jax.block_until_ready(out)

    ref = attention_time_ref(Q, K, V, wq, wk, wv, wp, bp, num_heads=H)
    # Tolerance covers the intentional bf16 quantization of the activations and
    # the fused input-projection weight plus the approximate EUP reciprocal in
    # the softmax (expected error ~1e-3; allowance is ~10x that).
    np.testing.assert_allclose(np.asarray(out), np.asarray(ref),
                               rtol=5e-2, atol=1e-2)

    print("KERNEL_OK")
</pallas_src>

<mosaic_0001>
module attributes {stable_mosaic.version = 11 : i64} {
  func.func @_attention_time_kernel(%arg0: i32, %arg1: memref<16x96xbf16, #tpu.memory_space<vmem>>, %arg2: memref<96x96xbf16, #tpu.memory_space<vmem>>, %arg3: memref<32x32xf32, #tpu.memory_space<vmem>>, %arg4: memref<1x32xf32, #tpu.memory_space<vmem>>, %arg5: memref<16x32xf32, #tpu.memory_space<vmem>>) attributes {dimension_semantics = [#tpu.dimension_semantics<parallel>], iteration_bounds = array<i64: 1>, scalar_prefetch = 0 : i64, scratch_operands = 0 : i64, tpu.core_type = #tpu.core_type<tc>, window_params = [{transform_indices = @transform_0, window_bounds = array<i64: 16, 96>}, {pipeline_mode = #tpu.pipeline_mode<synchronous>, transform_indices = @transform_1, window_bounds = array<i64: 96, 96>}, {pipeline_mode = #tpu.pipeline_mode<synchronous>, transform_indices = @transform_2, window_bounds = array<i64: 32, 32>}, {pipeline_mode = #tpu.pipeline_mode<synchronous>, transform_indices = @transform_3, window_bounds = array<i64: 1, 32>}, {transform_indices = @transform_4, window_bounds = array<i64: 16, 32>}]} {
    %c0 = arith.constant 0 : index
    %c0_0 = arith.constant 0 : index
    %0 = vector.load %arg1[%c0, %c0_0] : memref<16x96xbf16, #tpu.memory_space<vmem>>, vector<16x96xbf16>
    %c0_1 = arith.constant 0 : index
    %c0_2 = arith.constant 0 : index
    %1 = vector.load %arg2[%c0_1, %c0_2] : memref<96x96xbf16, #tpu.memory_space<vmem>>, vector<96x96xbf16>
    %cst = arith.constant dense<0.000000e+00> : vector<16x96xf32>
    %2 = tpu.matmul %0, %1, %cst {dimension_numbers = #tpu.dot_dimension_numbers<[1], [0], [0], [1], [0, 0, 1, 1], [], []>} : vector<16x96xbf16>, vector<96x96xbf16>, vector<16x96xf32> -> vector<16x96xf32>
    %3 = vector.extract_strided_slice %2 {offsets = [0, 0], sizes = [16, 32], strides = [1, 1]} : vector<16x96xf32> to vector<16x32xf32>
    %4 = vector.shape_cast %3 : vector<16x32xf32> to vector<2x8x32xf32>
    %5 = vector.extract_strided_slice %2 {offsets = [0, 32], sizes = [16, 32], strides = [1, 1]} : vector<16x96xf32> to vector<16x32xf32>
    %6 = vector.shape_cast %5 : vector<16x32xf32> to vector<2x8x32xf32>
    %7 = vector.extract_strided_slice %2 {offsets = [0, 64], sizes = [16, 32], strides = [1, 1]} : vector<16x96xf32> to vector<16x32xf32>
    %8 = vector.shape_cast %7 : vector<16x32xf32> to vector<2x8x32xf32>
    %cst_3 = arith.constant 0.000000e+00 : f32
    %9 = vector.broadcast %cst_3 : f32 to vector<16x32xf32>
    %10 = vector.extract_strided_slice %4 {offsets = [0, 0, 0], sizes = [2, 8, 8], strides = [1, 1, 1]} : vector<2x8x32xf32> to vector<2x8x8xf32>
    %11 = vector.extract_strided_slice %6 {offsets = [0, 0, 0], sizes = [2, 8, 8], strides = [1, 1, 1]} : vector<2x8x32xf32> to vector<2x8x8xf32>
    %12 = vector.extract_strided_slice %8 {offsets = [0, 0, 0], sizes = [2, 8, 8], strides = [1, 1, 1]} : vector<2x8x32xf32> to vector<2x8x8xf32>
    %cst_4 = arith.constant dense<0.000000e+00> : vector<2x8x8xf32>
    %13 = tpu.matmul %10, %11, %cst_4 {dimension_numbers = #tpu.dot_dimension_numbers<[2], [2], [1], [1], [0, 0, 0, 1, 1, 1], [0], [0]>} : vector<2x8x8xf32>, vector<2x8x8xf32>, vector<2x8x8xf32> -> vector<2x8x8xf32>
    %cst_5 = arith.constant dense<0xFF800000> : vector<2x8xf32>
    %14 = vector.multi_reduction <maximumf>, %13, %cst_5 [2] : vector<2x8x8xf32> to vector<2x8xf32>
    %15 = vector.shape_cast %14 : vector<2x8xf32> to vector<2x8x1xf32>
    %16 = vector.broadcast %15 : vector<2x8x1xf32> to vector<2x8x8xf32>
    %17 = arith.subf %13, %16 : vector<2x8x8xf32>
    %18 = math.exp %17 : vector<2x8x8xf32>
    %cst_6 = arith.constant dense<0.000000e+00> : vector<2x8xf32>
    %19 = vector.multi_reduction <add>, %18, %cst_6 [2] : vector<2x8x8xf32> to vector<2x8xf32>
    %20 = vector.shape_cast %19 : vector<2x8xf32> to vector<2x8x1xf32>
    %21 = tpu.reciprocal %20 {approx = true} : vector<2x8x1xf32> -> vector<2x8x1xf32>
    %22 = vector.broadcast %21 : vector<2x8x1xf32> to vector<2x8x8xf32>
    %23 = arith.mulf %18, %22 : vector<2x8x8xf32>
    %cst_7 = arith.constant dense<0.000000e+00> : vector<2x8x8xf32>
    %24 = tpu.matmul %23, %12, %cst_7 {dimension_numbers = #tpu.dot_dimension_numbers<[2], [1], [1], [2], [0, 0, 0, 1, 1, 2], [0], [0]>} : vector<2x8x8xf32>, vector<2x8x8xf32>, vector<2x8x8xf32> -> vector<2x8x8xf32>
    %25 = vector.shape_cast %24 : vector<2x8x8xf32> to vector<16x8xf32>
    %c0_8 = arith.constant 0 : index
    %c0_9 = arith.constant 0 : index
    %26 = vector.load %arg3[%c0_8, %c0_9] : memref<32x32xf32, #tpu.memory_space<vmem>>, vector<8x32xf32>
    %cst_10 = arith.constant dense<0.000000e+00> : vector<16x32xf32>
    %27 = tpu.matmul %25, %26, %cst_10 {dimension_numbers = #tpu.dot_dimension_numbers<[1], [0], [0], [1], [0, 0, 1, 1], [], []>} : vector<16x8xf32>, vector<8x32xf32>, vector<16x32xf32> -> vector<16x32xf32>
    %28 = arith.addf %9, %27 : vector<16x32xf32>
    %29 = vector.extract_strided_slice %4 {offsets = [0, 0, 8], sizes = [2, 8, 8], strides = [1, 1, 1]} : vector<2x8x32xf32> to vector<2x8x8xf32>
    %30 = vector.extract_strided_slice %6 {offsets = [0, 0, 8], sizes = [2, 8, 8], strides = [1, 1, 1]} : vector<2x8x32xf32> to vector<2x8x8xf32>
    %31 = vector.extract_strided_slice %8 {offsets = [0, 0, 8], sizes = [2, 8, 8], strides = [1, 1, 1]} : vector<2x8x32xf32> to vector<2x8x8xf32>
    %cst_11 = arith.constant dense<0.000000e+00> : vector<2x8x8xf32>
    %32 = tpu.matmul %29, %30, %cst_11 {dimension_numbers = #tpu.dot_dimension_numbers<[2], [2], [1], [1], [0, 0, 0, 1, 1, 1], [0], [0]>} : vector<2x8x8xf32>, vector<2x8x8xf32>, vector<2x8x8xf32> -> vector<2x8x8xf32>
    %cst_12 = arith.constant dense<0xFF800000> : vector<2x8xf32>
    %33 = vector.multi_reduction <maximumf>, %32, %cst_12 [2] : vector<2x8x8xf32> to vector<2x8xf32>
    %34 = vector.shape_cast %33 : vector<2x8xf32> to vector<2x8x1xf32>
    %35 = vector.broadcast %34 : vector<2x8x1xf32> to vector<2x8x8xf32>
    %36 = arith.subf %32, %35 : vector<2x8x8xf32>
    %37 = math.exp %36 : vector<2x8x8xf32>
    %cst_13 = arith.constant dense<0.000000e+00> : vector<2x8xf32>
    %38 = vector.multi_reduction <add>, %37, %cst_13 [2] : vector<2x8x8xf32> to vector<2x8xf32>
    %39 = vector.shape_cast %38 : vector<2x8xf32> to vector<2x8x1xf32>
    %40 = tpu.reciprocal %39 {approx = true} : vector<2x8x1xf32> -> vector<2x8x1xf32>
    %41 = vector.broadcast %40 : vector<2x8x1xf32> to vector<2x8x8xf32>
    %42 = arith.mulf %37, %41 : vector<2x8x8xf32>
    %cst_14 = arith.constant dense<0.000000e+00> : vector<2x8x8xf32>
    %43 = tpu.matmul %42, %31, %cst_14 {dimension_numbers = #tpu.dot_dimension_numbers<[2], [1], [1], [2], [0, 0, 0, 1, 1, 2], [0], [0]>} : vector<2x8x8xf32>, vector<2x8x8xf32>, vector<2x8x8xf32> -> vector<2x8x8xf32>
    %44 = vector.shape_cast %43 : vector<2x8x8xf32> to vector<16x8xf32>
    %c8 = arith.constant 8 : index
    %c0_15 = arith.constant 0 : index
    %45 = vector.load %arg3[%c8, %c0_15] : memref<32x32xf32, #tpu.memory_space<vmem>>, vector<8x32xf32>
    %cst_16 = arith.constant dense<0.000000e+00> : vector<16x32xf32>
    %46 = tpu.matmul %44, %45, %cst_16 {dimension_numbers = #tpu.dot_dimension_numbers<[1], [0], [0], [1], [0, 0, 1, 1], [], []>} : vector<16x8xf32>, vector<8x32xf32>, vector<16x32xf32> -> vector<16x32xf32>
    %47 = arith.addf %28, %46 : vector<16x32xf32>
    %48 = vector.extract_strided_slice %4 {offsets = [0, 0, 16], sizes = [2, 8, 8], strides = [1, 1, 1]} : vector<2x8x32xf32> to vector<2x8x8xf32>
    %49 = vector.extract_strided_slice %6 {offsets = [0, 0, 16], sizes = [2, 8, 8], strides = [1, 1, 1]} : vector<2x8x32xf32> to vector<2x8x8xf32>
    %50 = vector.extract_strided_slice %8 {offsets = [0, 0, 16], sizes = [2, 8, 8], strides = [1, 1, 1]} : vector<2x8x32xf32> to vector<2x8x8xf32>
    %cst_17 = arith.constant dense<0.000000e+00> : vector<2x8x8xf32>
    %51 = tpu.matmul %48, %49, %cst_17 {dimension_numbers = #tpu.dot_dimension_numbers<[2], [2], [1], [1], [0, 0, 0, 1, 1, 1], [0], [0]>} : vector<2x8x8xf32>, vector<2x8x8xf32>, vector<2x8x8xf32> -> vector<2x8x8xf32>
    %cst_18 = arith.constant dense<0xFF800000> : vector<2x8xf32>
    %52 = vector.multi_reduction <maximumf>, %51, %cst_18 [2] : vector<2x8x8xf32> to vector<2x8xf32>
    %53 = vector.shape_cast %52 : vector<2x8xf32> to vector<2x8x1xf32>
    %54 = vector.broadcast %53 : vector<2x8x1xf32> to vector<2x8x8xf32>
    %55 = arith.subf %51, %54 : vector<2x8x8xf32>
    %56 = math.exp %55 : vector<2x8x8xf32>
    %cst_19 = arith.constant dense<0.000000e+00> : vector<2x8xf32>
    %57 = vector.multi_reduction <add>, %56, %cst_19 [2] : vector<2x8x8xf32> to vector<2x8xf32>
    %58 = vector.shape_cast %57 : vector<2x8xf32> to vector<2x8x1xf32>
    %59 = tpu.reciprocal %58 {approx = true} : vector<2x8x1xf32> -> vector<2x8x1xf32>
    %60 = vector.broadcast %59 : vector<2x8x1xf32> to vector<2x8x8xf32>
    %61 = arith.mulf %56, %60 : vector<2x8x8xf32>
    %cst_20 = arith.constant dense<0.000000e+00> : vector<2x8x8xf32>
    %62 = tpu.matmul %61, %50, %cst_20 {dimension_numbers = #tpu.dot_dimension_numbers<[2], [1], [1], [2], [0, 0, 0, 1, 1, 2], [0], [0]>} : vector<2x8x8xf32>, vector<2x8x8xf32>, vector<2x8x8xf32> -> vector<2x8x8xf32>
    %63 = vector.shape_cast %62 : vector<2x8x8xf32> to vector<16x8xf32>
    %c16 = arith.constant 16 : index
    %c0_21 = arith.constant 0 : index
    %64 = vector.load %arg3[%c16, %c0_21] : memref<32x32xf32, #tpu.memory_space<vmem>>, vector<8x32xf32>
    %cst_22 = arith.constant dense<0.000000e+00> : vector<16x32xf32>
    %65 = tpu.matmul %63, %64, %cst_22 {dimension_numbers = #tpu.dot_dimension_numbers<[1], [0], [0], [1], [0, 0, 1, 1], [], []>} : vector<16x8xf32>, vector<8x32xf32>, vector<16x32xf32> -> vector<16x32xf32>
    %66 = arith.addf %47, %65 : vector<16x32xf32>
    %67 = vector.extract_strided_slice %4 {offsets = [0, 0, 24], sizes = [2, 8, 8], strides = [1, 1, 1]} : vector<2x8x32xf32> to vector<2x8x8xf32>
    %68 = vector.extract_strided_slice %6 {offsets = [0, 0, 24], sizes = [2, 8, 8], strides = [1, 1, 1]} : vector<2x8x32xf32> to vector<2x8x8xf32>
    %69 = vector.extract_strided_slice %8 {offsets = [0, 0, 24], sizes = [2, 8, 8], strides = [1, 1, 1]} : vector<2x8x32xf32> to vector<2x8x8xf32>
    %cst_23 = arith.constant dense<0.000000e+00> : vector<2x8x8xf32>
    %70 = tpu.matmul %67, %68, %cst_23 {dimension_numbers = #tpu.dot_dimension_numbers<[2], [2], [1], [1], [0, 0, 0, 1, 1, 1], [0], [0]>} : vector<2x8x8xf32>, vector<2x8x8xf32>, vector<2x8x8xf32> -> vector<2x8x8xf32>
    %cst_24 = arith.constant dense<0xFF800000> : vector<2x8xf32>
    %71 = vector.multi_reduction <maximumf>, %70, %cst_24 [2] : vector<2x8x8xf32> to vector<2x8xf32>
    %72 = vector.shape_cast %71 : vector<2x8xf32> to vector<2x8x1xf32>
    %73 = vector.broadcast %72 : vector<2x8x1xf32> to vector<2x8x8xf32>
    %74 = arith.subf %70, %73 : vector<2x8x8xf32>
    %75 = math.exp %74 : vector<2x8x8xf32>
    %cst_25 = arith.constant dense<0.000000e+00> : vector<2x8xf32>
    %76 = vector.multi_reduction <add>, %75, %cst_25 [2] : vector<2x8x8xf32> to vector<2x8xf32>
    %77 = vector.shape_cast %76 : vector<2x8xf32> to vector<2x8x1xf32>
    %78 = tpu.reciprocal %77 {approx = true} : vector<2x8x1xf32> -> vector<2x8x1xf32>
    %79 = vector.broadcast %78 : vector<2x8x1xf32> to vector<2x8x8xf32>
    %80 = arith.mulf %75, %79 : vector<2x8x8xf32>
    %cst_26 = arith.constant dense<0.000000e+00> : vector<2x8x8xf32>
    %81 = tpu.matmul %80, %69, %cst_26 {dimension_numbers = #tpu.dot_dimension_numbers<[2], [1], [1], [2], [0, 0, 0, 1, 1, 2], [0], [0]>} : vector<2x8x8xf32>, vector<2x8x8xf32>, vector<2x8x8xf32> -> vector<2x8x8xf32>
    %82 = vector.shape_cast %81 : vector<2x8x8xf32> to vector<16x8xf32>
    %c24 = arith.constant 24 : index
    %c0_27 = arith.constant 0 : index
    %83 = vector.load %arg3[%c24, %c0_27] : memref<32x32xf32, #tpu.memory_space<vmem>>, vector<8x32xf32>
    %cst_28 = arith.constant dense<0.000000e+00> : vector<16x32xf32>
    %84 = tpu.matmul %82, %83, %cst_28 {dimension_numbers = #tpu.dot_dimension_numbers<[1], [0], [0], [1], [0, 0, 1, 1], [], []>} : vector<16x8xf32>, vector<8x32xf32>, vector<16x32xf32> -> vector<16x32xf32>
    %85 = arith.addf %66, %84 : vector<16x32xf32>
    %c0_29 = arith.constant 0 : index
    %c0_30 = arith.constant 0 : index
    %86 = vector.load %arg4[%c0_29, %c0_30] : memref<1x32xf32, #tpu.memory_space<vmem>>, vector<1x32xf32>
    %87 = vector.broadcast %86 : vector<1x32xf32> to vector<16x32xf32>
    %88 = arith.addf %85, %87 : vector<16x32xf32>
    %c0_31 = arith.constant 0 : index
    %c0_32 = arith.constant 0 : index
    %89 = vector.load %arg5[%c0_31, %c0_32] : memref<16x32xf32, #tpu.memory_space<vmem>>, vector<16x32xf32>
    tpu.vector_store %arg5[%c0_31, %c0_32], %88 {strides = array<i32>} : memref<16x32xf32, #tpu.memory_space<vmem>>, vector<16x32xf32>,
    return
  }
  func.func @transform_0(%arg0: i32) -> (i32, i32) {
    %c0_i32 = arith.constant 0 : i32
    %c0_i32_0 = arith.constant 0 : i32
    return %arg0, %c0_i32 : i32, i32
  }
  func.func @transform_1(%arg0: i32) -> (i32, i32) {
    %c0_i32 = arith.constant 0 : i32
    %c0_i32_0 = arith.constant 0 : i32
    %c0_i32_1 = arith.constant 0 : i32
    return %c0_i32, %c0_i32_0 : i32, i32
  }
  func.func @transform_2(%arg0: i32) -> (i32, i32) {
    %c0_i32 = arith.constant 0 : i32
    %c0_i32_0 = arith.constant 0 : i32
    %c0_i32_1 = arith.constant 0 : i32
    return %c0_i32, %c0_i32_0 : i32, i32
  }
  func.func @transform_3(%arg0: i32) -> (i32, i32) {
    %c0_i32 = arith.constant 0 : i32
    %c0_i32_0 = arith.constant 0 : i32
    %c0_i32_1 = arith.constant 0 : i32
    return %c0_i32, %c0_i32_0 : i32, i32
  }
  func.func @transform_4(%arg0: i32) -> (i32, i32) {
    %c0_i32 = arith.constant 0 : i32
    %c0_i32_0 = arith.constant 0 : i32
    return %arg0, %c0_i32 : i32, i32
  }
}

</mosaic_0001>

<llo_original>
// kernel: tpu_custom_call.1
$region0: #{tpu_custom_call.1}
  #allocation0 [shape = 'u32[]', space=smem, size = 0x4, offset = 0x4, fixed_abs, tag = 'smem constant byte address 0x4 - core index']
  #allocation1 [shape = 'u32[144,128]{1,0:T(1,128)}', space=vmem, size = 0x12000, scoped, tag = 'internal scratch']
  %s0 = inlined_call_operand.hbm [shape: bf16[16,96], index: 0, kind: input, shape index: {}]
  %s1 = inlined_call_operand.hbm [shape: bf16[96,96], index: 1, kind: input, shape index: {}]
  %s2 = inlined_call_operand.hbm [shape: f32[32,32], index: 2, kind: input, shape index: {}]
  %s3 = inlined_call_operand.vmem [shape: f32[1,32], index: 3, kind: input, shape index: {}]
  %s4 = inlined_call_operand.hbm [shape: f32[16,32], index: 4, kind: output, shape index: {}]
  %s5 = sld [smem:[#allocation0]]
  $region38: #{tpu_custom_call.1} parent=0
    _
  %s7 = ssub.s32 1, %s5
  %s8 = scalar_select 0, %s7, %s5
  $region1: #{tpu_custom_call.1} parent=0
    #allocation2 [shape = 'u8[4096]{0}', space=vmem, size = 0x1000, scoped, tag = 'input window, operand 0, single buffered']
    #allocation3 [shape = 's32[1]{0}', space=sflag, size = 0x4, scoped, tag = 'scoped memory for tpu_custom_call.1']
    #allocation4 [shape = 's32[1]{0}', space=sflag, size = 0x4, scoped, tag = 'scoped memory for tpu_custom_call.1']
    #allocation5 [shape = 'u8[24576]{0}', space=vmem, size = 0x6000, scoped, tag = 'input window, operand 1, single buffered']
    #allocation6 [shape = 's32[1]{0}', space=sflag, size = 0x4, scoped, tag = 'scoped memory for tpu_custom_call.1']
    #allocation7 [shape = 'u8[16384]{0}', space=vmem, size = 0x4000, scoped, tag = 'input window, operand 2, single buffered']
    #allocation8 [shape = 'u8[8192]{0}', space=vmem, size = 0x2000, scoped, tag = 'output window, operand 0, single buffered']
    %9 = vsyncpa [#allocation3], 0
    %10 = vsyncpa [#allocation6], 0
    %11 = vsyncpa [#allocation4], 0
    // Predicated region
    $region2: #{tpu_custom_call.1} parent=1 // pred_check
      _
    $region3: #{tpu_custom_call.1} parent=1 // pred_check_branch
      %13 = sbr.rel (0) target = $region5
    $region4: #{tpu_custom_call.1} parent=1 // pred_region
      %s15 = ssub.s32 128, 128
      %16 = vsyncadd [#allocation3], %s15
      %s17 = sshll.u32 [#allocation2], 4
      %s18 = int_to_ptr.vmem [resolvable:$true] %s17
      %23 = dma.hbm_to_vmem [thread:$0]  %s0, 128, %s18, [#allocation3], 64, 64, 4
    $region5: #{tpu_custom_call.1} parent=1 // pred_fallthru
      _
    // Predicated region
    $region6: #{tpu_custom_call.1} parent=1 // pred_check
      _
    $region7: #{tpu_custom_call.1} parent=1 // pred_check_branch
      %25 = sbr.rel (0) target = $region9
    $region8: #{tpu_custom_call.1} parent=1 // pred_region
      %s27 = ssub.s32 768, 768
      %28 = vsyncadd [#allocation6], %s27
      %s29 = sshll.u32 [#allocation5], 4
      %s30 = int_to_ptr.vmem [resolvable:$true] %s29
      %35 = dma.hbm_to_vmem [thread:$0]  %s1, 768, %s30, [#allocation6], 64, 64, 4
    $region9: #{tpu_custom_call.1} parent=1 // pred_fallthru
      _
    // Predicated region
    $region10: #{tpu_custom_call.1} parent=1 // pred_check
      _
    $region11: #{tpu_custom_call.1} parent=1 // pred_check_branch
      %37 = sbr.rel (0) target = $region13
    $region12: #{tpu_custom_call.1} parent=1 // pred_region
      %s39 = ssub.s32 512, 512
      %40 = vsyncadd [#allocation6], %s39
      %s41 = sshll.u32 [#allocation7], 4
      %s42 = int_to_ptr.vmem [resolvable:$true] %s41
      %47 = dma.hbm_to_vmem [thread:$0]  %s2, 512, %s42, [#allocation6], 128, 128, 8
    $region13: #{tpu_custom_call.1} parent=1 // pred_fallthru
      _
    // Predicated region
    $region14: #{tpu_custom_call.1} parent=1 // pred_check
      _
    $region15: #{tpu_custom_call.1} parent=1 // pred_check_branch
      %49 = sbr.rel (0) target = $region17
    $region16: #{tpu_custom_call.1} parent=1 // pred_region
      _
    $region17: #{tpu_custom_call.1} parent=1 // pred_fallthru
      _
    // Predicated region
    $region18: #{tpu_custom_call.1} parent=1 // pred_check
      _
    $region19: #{tpu_custom_call.1} parent=1 // pred_check_branch
      %51 = sbr.rel (0) target = $region21
    $region20: #{tpu_custom_call.1} parent=1 // pred_region
      %52 = dma.done [#allocation3], 128
    $region21: #{tpu_custom_call.1} parent=1 // pred_fallthru
      _
    // Predicated region
    $region22: #{tpu_custom_call.1} parent=1 // pred_check
      _
    $region23: #{tpu_custom_call.1} parent=1 // pred_check_branch
      %54 = sbr.rel (0) target = $region25
    $region24: #{tpu_custom_call.1} parent=1 // pred_region
      %55 = dma.done [#allocation6], 768
    $region25: #{tpu_custom_call.1} parent=1 // pred_fallthru
      _
    // Predicated region
    $region26: #{tpu_custom_call.1} parent=1 // pred_check
      _
    $region27: #{tpu_custom_call.1} parent=1 // pred_check_branch
      %57 = sbr.rel (0) target = $region29
    $region28: #{tpu_custom_call.1} parent=1 // pred_region
      %58 = dma.done [#allocation6], 512
    $region29: #{tpu_custom_call.1} parent=1 // pred_fallthru
      _
    %v60 = vld [vmem:[#allocation2] sm:$0xf]
    %v61 = vld [vmem:[#allocation2 + $0x4] sm:$0xf]
    %v62 = vld [vmem:[#allocation5] sm:$0xf]
    %v63 = vld [vmem:[#allocation5 + $0x4] sm:$0xf]
    %v64 = vld [vmem:[#allocation5 + $0x8] sm:$0xf]
    %v65 = vld [vmem:[#allocation5 + $0xc] sm:$0xf]
    %v66 = vld [vmem:[#allocation5 + $0x10] sm:$0xf]
    %v67 = vld [vmem:[#allocation5 + $0x14] sm:$0xf]
    %v68 = vld [vmem:[#allocation5 + $0x18] sm:$0xf]
    %v69 = vld [vmem:[#allocation5 + $0x1c] sm:$0xf]
    %v70 = vld [vmem:[#allocation5 + $0x20] sm:$0xf]
    %v71 = vld [vmem:[#allocation5 + $0x24] sm:$0xf]
    %v72 = vld [vmem:[#allocation5 + $0x28] sm:$0xf]
    %v73 = vld [vmem:[#allocation5 + $0x2c] sm:$0xf]
    %v76 = vunpack.c.l.b16 %v60
    %v77 = vunpack.c.l.b16 %v61
    %v78 = vpack.c.b16 %v77, %v76
    %v91 = vunpack.c.l.b16 %v62
    %v92 = vunpack.c.l.b16 %v63
    %v93 = vunpack.c.l.b16 %v64
    %v94 = vunpack.c.l.b16 %v65
    %v95 = vunpack.c.l.b16 %v66
    %v96 = vunpack.c.l.b16 %v67
    %v97 = vunpack.c.l.b16 %v68
    %v98 = vunpack.c.l.b16 %v69
    %v99 = vunpack.c.l.b16 %v70
    %v100 = vunpack.c.l.b16 %v71
    %v101 = vunpack.c.l.b16 %v72
    %v102 = vunpack.c.l.b16 %v73
    %v103 = vpack.c.b16 %v92, %v91
    %v104 = vpack.c.b16 %v94, %v93
    %v105 = vpack.c.b16 %v96, %v95
    %v106 = vpack.c.b16 %v98, %v97
    %v107 = vpack.c.b16 %v100, %v99
    %v108 = vpack.c.b16 %v102, %v101
    %vm115 = vcmask 785408
    %v117 = vsel %vm115, %v78, 0
    %119 = vmatprep.subr.bf16.mxu0 0
    %120 = vmatpush1.bf16.msra.mxu0 0
    %121 = vmatprep.subr.bf16.mxu0 0
    %122 = vmatpush1.bf16.msra.mxu0 0
    %123 = vmatprep.subr.bf16.mxu0 0
    %124 = vmatpush1.bf16.msra.mxu0 %v108
    %125 = vmatprep.subr.bf16.mxu0 0
    %126 = vmatpush1.bf16.msra.mxu0 %v107
    %127 = vmatprep.subr.bf16.mxu0 0
    %128 = vmatpush1.bf16.msra.mxu0 %v106
    %129 = vmatprep.subr.bf16.mxu0 0
    %130 = vmatpush1.bf16.msra.mxu0 %v105
    %131 = vmatprep.subr.bf16.mxu0 0
    %132 = vmatpush1.bf16.msra.mxu0 %v104
    %133 = vmatprep.subr.bf16.mxu0 0
    %134 = vmatpush1.bf16.msra.mxu0 %v103
    %135 = vmatprep.subr.bf16.mxu0 0
    %136 = vmatpush2.bf16.msra.mxu0 0
    %137 = vmatprep.subr.bf16.mxu0 0
    %138 = vmatpush2.bf16.msra.mxu0 0
    %139 = vmatprep.subr.bf16.mxu0 0
    %140 = vmatpush2.bf16.msra.mxu0 0
    %141 = vmatprep.subr.bf16.mxu0 0
    %142 = vmatpush2.bf16.msra.mxu0 0
    %143 = vmatprep.subr.bf16.mxu0 0
    %144 = vmatpush2.bf16.msra.mxu0 0
    %145 = vmatprep.subr.bf16.mxu0 0
    %146 = vmatpush2.bf16.msra.mxu0 0
    %147 = vmatprep.subr.bf16.mxu0 0
    %148 = vmatpush2.bf16.msra.mxu0 0
    %149 = vmatprep.subr.bf16.mxu0 0
    %150 = vmatpush2.bf16.msra.mxu0 0
    %151 = vmatprep.mubr.bf16.mxu0 0
    %152 = vmatmul.mubr.bf16.gmra.mxu0 %v117
    %v153 = vpop.f32.mrf.mxu0
    %v154 = vadd.f32 0.0, %v153
    %v155 = vpop.f32.mrf.mxu0
    %v156 = vpop.f32.mrf.mxu0
    %v157 = vadd.f32 0.0, %v156
    %v158 = vpop.f32.mrf.mxu0
    %159 = vdwg.mxu0
    %161 = vrot.lane.b32.xlu0 %v154, 96
    %v162 = vpop.permute.xlu0 %161
    %vm163 = vcmask 64512
    %v164 = vsel %vm163, %v154, 0
    %v166 = vsel %vm163, %v162, 0
    %168 = vmatprep.subr.mxu0 0.0
    %169 = vmatpush1.xpose.msra.mxu0 0.0
    %170 = vmatprep.subr.mxu0 0.0
    %171 = vmatpush1.xpose.msra.mxu0 0.0
    %172 = vmatprep.subr.mxu0 0.0
    %173 = vmatpush1.xpose.msra.mxu0 0.0
    %174 = vmatprep.subr.mxu0 0.0
    %175 = vmatpush1.xpose.msra.mxu0 0.0
    %176 = vmatprep.subr.mxu0 0.0
    %177 = vmatpush1.xpose.msra.mxu0 0.0
    %178 = vmatprep.subr.mxu0 0.0
    %179 = vmatpush1.xpose.msra.mxu0 0.0
    %180 = vmatprep.subr.mxu0 0.0
    %181 = vmatpush1.xpose.msra.mxu0 0.0
    %182 = vmatprep.subr.mxu0 0.0
    %183 = vmatpush1.xpose.msra.mxu0 0.0
    %184 = vmatprep.subr.mxu0 0.0
    %185 = vmatpush1.xpose.msra.mxu0 0.0
    %186 = vmatprep.subr.mxu0 0.0
    %187 = vmatpush1.xpose.msra.mxu0 0.0
    %188 = vmatprep.subr.mxu0 0.0
    %189 = vmatpush1.xpose.msra.mxu0 0.0
    %190 = vmatprep.subr.mxu0 0.0
    %191 = vmatpush1.xpose.msra.mxu0 0.0
    %192 = vmatprep.subr.mxu0 0.0
    %193 = vmatpush1.xpose.msra.mxu0 0.0
    %194 = vmatprep.subr.mxu0 0.0
    %195 = vmatpush1.xpose.msra.mxu0 0.0
    %196 = vmatprep.subr.mxu0 0.0
    %197 = vmatpush1.xpose.msra.mxu0 0.0
    %198 = vmatprep.subr.mxu0 0.0
    %199 = vmatpush1.xpose.msra.mxu0 %v166
    %200 = vmatprep.subr.mxu0 0.0
    %201 = vmatpush2.xpose.msra.mxu0 0.0
    %202 = vmatprep.subr.mxu0 0.0
    %203 = vmatpush2.xpose.msra.mxu0 0.0
    %204 = vmatprep.subr.mxu0 0.0
    %205 = vmatpush2.xpose.msra.mxu0 0.0
    %206 = vmatprep.subr.mxu0 0.0
    %207 = vmatpush2.xpose.msra.mxu0 0.0
    %208 = vmatprep.subr.mxu0 0.0
    %209 = vmatpush2.xpose.msra.mxu0 0.0
    %210 = vmatprep.subr.mxu0 0.0
    %211 = vmatpush2.xpose.msra.mxu0 0.0
    %212 = vmatprep.subr.mxu0 0.0
    %213 = vmatpush2.xpose.msra.mxu0 0.0
    %214 = vmatprep.subr.mxu0 0.0
    %215 = vmatpush2.xpose.msra.mxu0 0.0
    %216 = vmatprep.subr.mxu0 0.0
    %217 = vmatpush2.xpose.msra.mxu0 0.0
    %218 = vmatprep.subr.mxu0 0.0
    %219 = vmatpush2.xpose.msra.mxu0 0.0
    %220 = vmatprep.subr.mxu0 0.0
    %221 = vmatpush2.xpose.msra.mxu0 0.0
    %222 = vmatprep.subr.mxu0 0.0
    %223 = vmatpush2.xpose.msra.mxu0 0.0
    %224 = vmatprep.subr.mxu0 0.0
    %225 = vmatpush2.xpose.msra.mxu0 0.0
    %226 = vmatprep.subr.mxu0 0.0
    %227 = vmatpush2.xpose.msra.mxu0 0.0
    %228 = vmatprep.subr.mxu0 0.0
    %229 = vmatpush2.xpose.msra.mxu0 0.0
    %230 = vmatprep.subr.mxu0 0.0
    %231 = vmatpush2.xpose.msra.mxu0 0.0
    %232 = vmatprep.mubr.f32.mxu0 0.0
    %233 = vmatmul.mubr.f32.gmra.mxu0 %v164
    %v234 = vpop.f32.mrf.mxu0
    %v235 = vadd.f32 0.0, %v234
    %v236 = vpop.f32.mrf.mxu0
    %237 = vdwg.mxu0
    %239 = vrot.lane.b32.xlu0 %v157, 96
    %v240 = vpop.permute.xlu0 %239
    %v241 = vsel %vm163, %v157, 0
    %v243 = vsel %vm163, %v240, 0
    %245 = vmatprep.subr.mxu0 0.0
    %246 = vmatpush1.xpose.msra.mxu0 0.0
    %247 = vmatprep.subr.mxu0 0.0
    %248 = vmatpush1.xpose.msra.mxu0 0.0
    %249 = vmatprep.subr.mxu0 0.0
    %250 = vmatpush1.xpose.msra.mxu0 0.0
    %251 = vmatprep.subr.mxu0 0.0
    %252 = vmatpush1.xpose.msra.mxu0 0.0
    %253 = vmatprep.subr.mxu0 0.0
    %254 = vmatpush1.xpose.msra.mxu0 0.0
    %255 = vmatprep.subr.mxu0 0.0
    %256 = vmatpush1.xpose.msra.mxu0 0.0
    %257 = vmatprep.subr.mxu0 0.0
    %258 = vmatpush1.xpose.msra.mxu0 0.0
    %259 = vmatprep.subr.mxu0 0.0
    %260 = vmatpush1.xpose.msra.mxu0 0.0
    %261 = vmatprep.subr.mxu0 0.0
    %262 = vmatpush1.xpose.msra.mxu0 0.0
    %263 = vmatprep.subr.mxu0 0.0
    %264 = vmatpush1.xpose.msra.mxu0 0.0
    %265 = vmatprep.subr.mxu0 0.0
    %266 = vmatpush1.xpose.msra.mxu0 0.0
    %267 = vmatprep.subr.mxu0 0.0
    %268 = vmatpush1.xpose.msra.mxu0 0.0
    %269 = vmatprep.subr.mxu0 0.0
    %270 = vmatpush1.xpose.msra.mxu0 0.0
    %271 = vmatprep.subr.mxu0 0.0
    %272 = vmatpush1.xpose.msra.mxu0 0.0
    %273 = vmatprep.subr.mxu0 0.0
    %274 = vmatpush1.xpose.msra.mxu0 0.0
    %275 = vmatprep.subr.mxu0 0.0
    %276 = vmatpush1.xpose.msra.mxu0 %v243
    %277 = vmatprep.subr.mxu0 0.0
    %278 = vmatpush2.xpose.msra.mxu0 0.0
    %279 = vmatprep.subr.mxu0 0.0
    %280 = vmatpush2.xpose.msra.mxu0 0.0
    %281 = vmatprep.subr.mxu0 0.0
    %282 = vmatpush2.xpose.msra.mxu0 0.0
    %283 = vmatprep.subr.mxu0 0.0
    %284 = vmatpush2.xpose.msra.mxu0 0.0
    %285 = vmatprep.subr.mxu0 0.0
    %286 = vmatpush2.xpose.msra.mxu0 0.0
    %287 = vmatprep.subr.mxu0 0.0
    %288 = vmatpush2.xpose.msra.mxu0 0.0
    %289 = vmatprep.subr.mxu0 0.0
    %290 = vmatpush2.xpose.msra.mxu0 0.0
    %291 = vmatprep.subr.mxu0 0.0
    %292 = vmatpush2.xpose.msra.mxu0 0.0
    %293 = vmatprep.subr.mxu0 0.0
    %294 = vmatpush2.xpose.msra.mxu0 0.0
    %295 = vmatprep.subr.mxu0 0.0
    %296 = vmatpush2.xpose.msra.mxu0 0.0
    %297 = vmatprep.subr.mxu0 0.0
    %298 = vmatpush2.xpose.msra.mxu0 0.0
    %299 = vmatprep.subr.mxu0 0.0
    %300 = vmatpush2.xpose.msra.mxu0 0.0
    %301 = vmatprep.subr.mxu0 0.0
    %302 = vmatpush2.xpose.msra.mxu0 0.0
    %303 = vmatprep.subr.mxu0 0.0
    %304 = vmatpush2.xpose.msra.mxu0 0.0
    %305 = vmatprep.subr.mxu0 0.0
    %306 = vmatpush2.xpose.msra.mxu0 0.0
    %307 = vmatprep.subr.mxu0 0.0
    %308 = vmatpush2.xpose.msra.mxu0 0.0
    %309 = vmatprep.mubr.f32.mxu0 0.0
    %310 = vmatmul.mubr.f32.gmra.mxu0 %v241
    %v311 = vpop.f32.mrf.mxu0
    %v312 = vadd.f32 0.0, %v311
    %v313 = vpop.f32.mrf.mxu0
    %314 = vdwg.mxu0
    %v315 = vsel %vm163, %v235, -inf
    %316 = vmax.xlane.f32.xlu0 %v315
    %v317 = vpop.xlane.xlu0 %316
    %v318 = vsel %vm163, %v312, -inf
    %319 = vmax.xlane.f32.xlu0 %v318
    %v320 = vpop.xlane.xlu0 %319
    %v321 = vsub.f32 %v235, %v317
    %v322 = vsub.f32 %v312, %v320
    %v323 = vmul.f32 %v321, 1.442695
    %v324 = vpow.pop %v323
    %v325 = vmul.f32 %v322, 1.442695
    %v326 = vpow.pop %v325
    %v327 = vsel %vm163, %v324, 0.0
    %328 = vadd.xlane.f32.xlu0 %v327
    %v329 = vpop.xlane.xlu0 %328
    %v330 = vsel %vm163, %v326, 0.0
    %331 = vadd.xlane.f32.xlu0 %v330
    %v332 = vpop.xlane.xlu0 %331
    %v333 = vrcp.pop %v329
    %v334 = vrcp.pop %v332
    %v335 = vmul.f32 %v324, %v333
    %v336 = vmul.f32 %v326, %v334
    %337 = vrot.lane.b32.xlu0 %v154, 64
    %v338 = vpop.permute.xlu0 %337
    %v341 = vsel %vm163, %v335, 0
    %343 = vmatprep.subr.mxu0 0.0
    %344 = vmatpush1.msra.mxu0 0.0
    %345 = vmatprep.subr.mxu0 0.0
    %346 = vmatpush1.msra.mxu0 0.0
    %347 = vmatprep.subr.mxu0 0.0
    %348 = vmatpush1.msra.mxu0 0.0
    %349 = vmatprep.subr.mxu0 0.0
    %350 = vmatpush1.msra.mxu0 0.0
    %351 = vmatprep.subr.mxu0 0.0
    %352 = vmatpush1.msra.mxu0 0.0
    %353 = vmatprep.subr.mxu0 0.0
    %354 = vmatpush1.msra.mxu0 0.0
    %355 = vmatprep.subr.mxu0 0.0
    %356 = vmatpush1.msra.mxu0 0.0
    %357 = vmatprep.subr.mxu0 0.0
    %358 = vmatpush1.msra.mxu0 0.0
    %359 = vmatprep.subr.mxu0 0.0
    %360 = vmatpush1.msra.mxu0 0.0
    %361 = vmatprep.subr.mxu0 0.0
    %362 = vmatpush1.msra.mxu0 0.0
    %363 = vmatprep.subr.mxu0 0.0
    %364 = vmatpush1.msra.mxu0 0.0
    %365 = vmatprep.subr.mxu0 0.0
    %366 = vmatpush1.msra.mxu0 0.0
    %367 = vmatprep.subr.mxu0 0.0
    %368 = vmatpush1.msra.mxu0 0.0
    %369 = vmatprep.subr.mxu0 0.0
    %370 = vmatpush1.msra.mxu0 0.0
    %371 = vmatprep.subr.mxu0 0.0
    %372 = vmatpush1.msra.mxu0 0.0
    %373 = vmatprep.subr.mxu0 0.0
    %374 = vmatpush1.msra.mxu0 %v338
    %375 = vmatprep.subr.mxu0 0.0
    %376 = vmatpush2.msra.mxu0 0.0
    %377 = vmatprep.subr.mxu0 0.0
    %378 = vmatpush2.msra.mxu0 0.0
    %379 = vmatprep.subr.mxu0 0.0
    %380 = vmatpush2.msra.mxu0 0.0
    %381 = vmatprep.subr.mxu0 0.0
    %382 = vmatpush2.msra.mxu0 0.0
    %383 = vmatprep.subr.mxu0 0.0
    %384 = vmatpush2.msra.mxu0 0.0
    %385 = vmatprep.subr.mxu0 0.0
    %386 = vmatpush2.msra.mxu0 0.0
    %387 = vmatprep.subr.mxu0 0.0
    %388 = vmatpush2.msra.mxu0 0.0
    %389 = vmatprep.subr.mxu0 0.0
    %390 = vmatpush2.msra.mxu0 0.0
    %391 = vmatprep.subr.mxu0 0.0
    %392 = vmatpush2.msra.mxu0 0.0
    %393 = vmatprep.subr.mxu0 0.0
    %394 = vmatpush2.msra.mxu0 0.0
    %395 = vmatprep.subr.mxu0 0.0
    %396 = vmatpush2.msra.mxu0 0.0
    %397 = vmatprep.subr.mxu0 0.0
    %398 = vmatpush2.msra.mxu0 0.0
    %399 = vmatprep.subr.mxu0 0.0
    %400 = vmatpush2.msra.mxu0 0.0
    %401 = vmatprep.subr.mxu0 0.0
    %402 = vmatpush2.msra.mxu0 0.0
    %403 = vmatprep.subr.mxu0 0.0
    %404 = vmatpush2.msra.mxu0 0.0
    %405 = vmatprep.subr.mxu0 0.0
    %406 = vmatpush2.msra.mxu0 0.0
    %407 = vmatprep.mubr.f32.mxu0 0.0
    %408 = vmatmul.mubr.f32.gmra.mxu0 %v341
    %v409 = vpop.f32.mrf.mxu0
    %v410 = vadd.f32 0.0, %v409
    %v411 = vpop.f32.mrf.mxu0
    %412 = vdwg.mxu0
    %413 = vrot.lane.b32.xlu0 %v157, 64
    %v414 = vpop.permute.xlu0 %413
    %v417 = vsel %vm163, %v336, 0
    %419 = vmatprep.subr.mxu0 0.0
    %420 = vmatpush1.msra.mxu0 0.0
    %421 = vmatprep.subr.mxu0 0.0
    %422 = vmatpush1.msra.mxu0 0.0
    %423 = vmatprep.subr.mxu0 0.0
    %424 = vmatpush1.msra.mxu0 0.0
    %425 = vmatprep.subr.mxu0 0.0
    %426 = vmatpush1.msra.mxu0 0.0
    %427 = vmatprep.subr.mxu0 0.0
    %428 = vmatpush1.msra.mxu0 0.0
    %429 = vmatprep.subr.mxu0 0.0
    %430 = vmatpush1.msra.mxu0 0.0
    %431 = vmatprep.subr.mxu0 0.0
    %432 = vmatpush1.msra.mxu0 0.0
    %433 = vmatprep.subr.mxu0 0.0
    %434 = vmatpush1.msra.mxu0 0.0
    %435 = vmatprep.subr.mxu0 0.0
    %436 = vmatpush1.msra.mxu0 0.0
    %437 = vmatprep.subr.mxu0 0.0
    %438 = vmatpush1.msra.mxu0 0.0
    %439 = vmatprep.subr.mxu0 0.0
    %440 = vmatpush1.msra.mxu0 0.0
    %441 = vmatprep.subr.mxu0 0.0
    %442 = vmatpush1.msra.mxu0 0.0
    %443 = vmatprep.subr.mxu0 0.0
    %444 = vmatpush1.msra.mxu0 0.0
    %445 = vmatprep.subr.mxu0 0.0
    %446 = vmatpush1.msra.mxu0 0.0
    %447 = vmatprep.subr.mxu0 0.0
    %448 = vmatpush1.msra.mxu0 0.0
    %449 = vmatprep.subr.mxu0 0.0
    %450 = vmatpush1.msra.mxu0 %v414
    %451 = vmatprep.subr.mxu0 0.0
    %452 = vmatpush2.msra.mxu0 0.0
    %453 = vmatprep.subr.mxu0 0.0
    %454 = vmatpush2.msra.mxu0 0.0
    %455 = vmatprep.subr.mxu0 0.0
    %456 = vmatpush2.msra.mxu0 0.0
    %457 = vmatprep.subr.mxu0 0.0
    %458 = vmatpush2.msra.mxu0 0.0
    %459 = vmatprep.subr.mxu0 0.0
    %460 = vmatpush2.msra.mxu0 0.0
    %461 = vmatprep.subr.mxu0 0.0
    %462 = vmatpush2.msra.mxu0 0.0
    %463 = vmatprep.subr.mxu0 0.0
    %464 = vmatpush2.msra.mxu0 0.0
    %465 = vmatprep.subr.mxu0 0.0
    %466 = vmatpush2.msra.mxu0 0.0
    %467 = vmatprep.subr.mxu0 0.0
    %468 = vmatpush2.msra.mxu0 0.0
    %469 = vmatprep.subr.mxu0 0.0
    %470 = vmatpush2.msra.mxu0 0.0
    %471 = vmatprep.subr.mxu0 0.0
    %472 = vmatpush2.msra.mxu0 0.0
    %473 = vmatprep.subr.mxu0 0.0
    %474 = vmatpush2.msra.mxu0 0.0
    %475 = vmatprep.subr.mxu0 0.0
    %476 = vmatpush2.msra.mxu0 0.0
    %477 = vmatprep.subr.mxu0 0.0
    %478 = vmatpush2.msra.mxu0 0.0
    %479 = vmatprep.subr.mxu0 0.0
    %480 = vmatpush2.msra.mxu0 0.0
    %481 = vmatprep.subr.mxu0 0.0
    %482 = vmatpush2.msra.mxu0 0.0
    %483 = vmatprep.mubr.f32.mxu0 0.0
    %484 = vmatmul.mubr.f32.gmra.mxu0 %v417
    %v485 = vpop.f32.mrf.mxu0
    %v486 = vadd.f32 0.0, %v485
    %v487 = vpop.f32.mrf.mxu0
    %488 = vdwg.mxu0
    %v489 = vld [vmem:[#allocation7] sm:$0xff]
    %490 = vrot.lane.b32.xlu0 %v154, 120
    %v491 = vpop.permute.xlu0 %490
    %492 = vrot.lane.b32.xlu0 %v154, 88
    %v493 = vpop.permute.xlu0 %492
    %v494 = vsel %vm163, %v491, 0
    %v496 = vsel %vm163, %v493, 0
    %498 = vmatprep.subr.mxu0 0.0
    %499 = vmatpush1.xpose.msra.mxu0 0.0
    %500 = vmatprep.subr.mxu0 0.0
    %501 = vmatpush1.xpose.msra.mxu0 0.0
    %502 = vmatprep.subr.mxu0 0.0
    %503 = vmatpush1.xpose.msra.mxu0 0.0
    %504 = vmatprep.subr.mxu0 0.0
    %505 = vmatpush1.xpose.msra.mxu0 0.0
    %506 = vmatprep.subr.mxu0 0.0
    %507 = vmatpush1.xpose.msra.mxu0 0.0
    %508 = vmatprep.subr.mxu0 0.0
    %509 = vmatpush1.xpose.msra.mxu0 0.0
    %510 = vmatprep.subr.mxu0 0.0
    %511 = vmatpush1.xpose.msra.mxu0 0.0
    %512 = vmatprep.subr.mxu0 0.0
    %513 = vmatpush1.xpose.msra.mxu0 0.0
    %514 = vmatprep.subr.mxu0 0.0
    %515 = vmatpush1.xpose.msra.mxu0 0.0
    %516 = vmatprep.subr.mxu0 0.0
    %517 = vmatpush1.xpose.msra.mxu0 0.0
    %518 = vmatprep.subr.mxu0 0.0
    %519 = vmatpush1.xpose.msra.mxu0 0.0
    %520 = vmatprep.subr.mxu0 0.0
    %521 = vmatpush1.xpose.msra.mxu0 0.0
    %522 = vmatprep.subr.mxu0 0.0
    %523 = vmatpush1.xpose.msra.mxu0 0.0
    %524 = vmatprep.subr.mxu0 0.0
    %525 = vmatpush1.xpose.msra.mxu0 0.0
    %526 = vmatprep.subr.mxu0 0.0
    %527 = vmatpush1.xpose.msra.mxu0 0.0
    %528 = vmatprep.subr.mxu0 0.0
    %529 = vmatpush1.xpose.msra.mxu0 %v496
    %530 = vmatprep.subr.mxu0 0.0
    %531 = vmatpush2.xpose.msra.mxu0 0.0
    %532 = vmatprep.subr.mxu0 0.0
    %533 = vmatpush2.xpose.msra.mxu0 0.0
    %534 = vmatprep.subr.mxu0 0.0
    %535 = vmatpush2.xpose.msra.mxu0 0.0
    %536 = vmatprep.subr.mxu0 0.0
    %537 = vmatpush2.xpose.msra.mxu0 0.0
    %538 = vmatprep.subr.mxu0 0.0
    %539 = vmatpush2.xpose.msra.mxu0 0.0
    %540 = vmatprep.subr.mxu0 0.0
    %541 = vmatpush2.xpose.msra.mxu0 0.0
    %542 = vmatprep.subr.mxu0 0.0
    %543 = vmatpush2.xpose.msra.mxu0 0.0
    %544 = vmatprep.subr.mxu0 0.0
    %545 = vmatpush2.xpose.msra.mxu0 0.0
    %546 = vmatprep.subr.mxu0 0.0
    %547 = vmatpush2.xpose.msra.mxu0 0.0
    %548 = vmatprep.subr.mxu0 0.0
    %549 = vmatpush2.xpose.msra.mxu0 0.0
    %550 = vmatprep.subr.mxu0 0.0
    %551 = vmatpush2.xpose.msra.mxu0 0.0
    %552 = vmatprep.subr.mxu0 0.0
    %553 = vmatpush2.xpose.msra.mxu0 0.0
    %554 = vmatprep.subr.mxu0 0.0
    %555 = vmatpush2.xpose.msra.mxu0 0.0
    %556 = vmatprep.subr.mxu0 0.0
    %557 = vmatpush2.xpose.msra.mxu0 0.0
    %558 = vmatprep.subr.mxu0 0.0
    %559 = vmatpush2.xpose.msra.mxu0 0.0
    %560 = vmatprep.subr.mxu0 0.0
    %561 = vmatpush2.xpose.msra.mxu0 0.0
    %562 = vmatprep.mubr.f32.mxu0 0.0
    %563 = vmatmul.mubr.f32.gmra.mxu0 %v494
    %v564 = vpop.f32.mrf.mxu0
    %v565 = vadd.f32 0.0, %v564
    %v566 = vpop.f32.mrf.mxu0
    %567 = vdwg.mxu0
    %568 = vrot.lane.b32.xlu0 %v157, 120
    %v569 = vpop.permute.xlu0 %568
    %570 = vrot.lane.b32.xlu0 %v157, 88
    %v571 = vpop.permute.xlu0 %570
    %v572 = vsel %vm163, %v569, 0
    %v574 = vsel %vm163, %v571, 0
    %576 = vmatprep.subr.mxu0 0.0
    %577 = vmatpush1.xpose.msra.mxu0 0.0
    %578 = vmatprep.subr.mxu0 0.0
    %579 = vmatpush1.xpose.msra.mxu0 0.0
    %580 = vmatprep.subr.mxu0 0.0
    %581 = vmatpush1.xpose.msra.mxu0 0.0
    %582 = vmatprep.subr.mxu0 0.0
    %583 = vmatpush1.xpose.msra.mxu0 0.0
    %584 = vmatprep.subr.mxu0 0.0
    %585 = vmatpush1.xpose.msra.mxu0 0.0
    %586 = vmatprep.subr.mxu0 0.0
    %587 = vmatpush1.xpose.msra.mxu0 0.0
    %588 = vmatprep.subr.mxu0 0.0
    %589 = vmatpush1.xpose.msra.mxu0 0.0
    %590 = vmatprep.subr.mxu0 0.0
    %591 = vmatpush1.xpose.msra.mxu0 0.0
    %592 = vmatprep.subr.mxu0 0.0
    %593 = vmatpush1.xpose.msra.mxu0 0.0
    %594 = vmatprep.subr.mxu0 0.0
    %595 = vmatpush1.xpose.msra.mxu0 0.0
    %596 = vmatprep.subr.mxu0 0.0
    %597 = vmatpush1.xpose.msra.mxu0 0.0
    %598 = vmatprep.subr.mxu0 0.0
    %599 = vmatpush1.xpose.msra.mxu0 0.0
    %600 = vmatprep.subr.mxu0 0.0
    %601 = vmatpush1.xpose.msra.mxu0 0.0
    %602 = vmatprep.subr.mxu0 0.0
    %603 = vmatpush1.xpose.msra.mxu0 0.0
    %604 = vmatprep.subr.mxu0 0.0
    %605 = vmatpush1.xpose.msra.mxu0 0.0
    %606 = vmatprep.subr.mxu0 0.0
    %607 = vmatpush1.xpose.msra.mxu0 %v574
    %608 = vmatprep.subr.mxu0 0.0
    %609 = vmatpush2.xpose.msra.mxu0 0.0
    %610 = vmatprep.subr.mxu0 0.0
    %611 = vmatpush2.xpose.msra.mxu0 0.0
    %612 = vmatprep.subr.mxu0 0.0
    %613 = vmatpush2.xpose.msra.mxu0 0.0
    %614 = vmatprep.subr.mxu0 0.0
    %615 = vmatpush2.xpose.msra.mxu0 0.0
    %616 = vmatprep.subr.mxu0 0.0
    %617 = vmatpush2.xpose.msra.mxu0 0.0
    %618 = vmatprep.subr.mxu0 0.0
    %619 = vmatpush2.xpose.msra.mxu0 0.0
    %620 = vmatprep.subr.mxu0 0.0
    %621 = vmatpush2.xpose.msra.mxu0 0.0
    %622 = vmatprep.subr.mxu0 0.0
    %623 = vmatpush2.xpose.msra.mxu0 0.0
    %624 = vmatprep.subr.mxu0 0.0
    %625 = vmatpush2.xpose.msra.mxu0 0.0
    %626 = vmatprep.subr.mxu0 0.0
    %627 = vmatpush2.xpose.msra.mxu0 0.0
    %628 = vmatprep.subr.mxu0 0.0
    %629 = vmatpush2.xpose.msra.mxu0 0.0
    %630 = vmatprep.subr.mxu0 0.0
    %631 = vmatpush2.xpose.msra.mxu0 0.0
    %632 = vmatprep.subr.mxu0 0.0
    %633 = vmatpush2.xpose.msra.mxu0 0.0
    %634 = vmatprep.subr.mxu0 0.0
    %635 = vmatpush2.xpose.msra.mxu0 0.0
    %636 = vmatprep.subr.mxu0 0.0
    %637 = vmatpush2.xpose.msra.mxu0 0.0
    %638 = vmatprep.subr.mxu0 0.0
    %639 = vmatpush2.xpose.msra.mxu0 0.0
    %640 = vmatprep.mubr.f32.mxu0 0.0
    %641 = vmatmul.mubr.f32.gmra.mxu0 %v572
    %v642 = vpop.f32.mrf.mxu0
    %v643 = vadd.f32 0.0, %v642
    %v644 = vpop.f32.mrf.mxu0
    %645 = vdwg.mxu0
    %v646 = vsel %vm163, %v565, -inf
    %647 = vmax.xlane.f32.xlu0 %v646
    %v648 = vpop.xlane.xlu0 %647
    %v649 = vsel %vm163, %v643, -inf
    %650 = vmax.xlane.f32.xlu0 %v649
    %v651 = vpop.xlane.xlu0 %650
    %v652 = vsub.f32 %v565, %v648
    %v653 = vsub.f32 %v643, %v651
    %v654 = vmul.f32 %v652, 1.442695
    %v655 = vpow.pop %v654
    %v656 = vmul.f32 %v653, 1.442695
    %v657 = vpow.pop %v656
    %v658 = vsel %vm163, %v655, 0.0
    %659 = vadd.xlane.f32.xlu0 %v658
    %v660 = vpop.xlane.xlu0 %659
    %v661 = vsel %vm163, %v657, 0.0
    %662 = vadd.xlane.f32.xlu0 %v661
    %v663 = vpop.xlane.xlu0 %662
    %v664 = vrcp.pop %v660
    %v665 = vrcp.pop %v663
    %v666 = vmul.f32 %v655, %v664
    %v667 = vmul.f32 %v657, %v665
    %668 = vrot.lane.b32.xlu0 %v154, 56
    %v669 = vpop.permute.xlu0 %668
    %v672 = vsel %vm163, %v666, 0
    %674 = vmatprep.subr.mxu0 0.0
    %675 = vmatpush1.msra.mxu0 0.0
    %676 = vmatprep.subr.mxu0 0.0
    %677 = vmatpush1.msra.mxu0 0.0
    %678 = vmatprep.subr.mxu0 0.0
    %679 = vmatpush1.msra.mxu0 0.0
    %680 = vmatprep.subr.mxu0 0.0
    %681 = vmatpush1.msra.mxu0 0.0
    %682 = vmatprep.subr.mxu0 0.0
    %683 = vmatpush1.msra.mxu0 0.0
    %684 = vmatprep.subr.mxu0 0.0
    %685 = vmatpush1.msra.mxu0 0.0
    %686 = vmatprep.subr.mxu0 0.0
    %687 = vmatpush1.msra.mxu0 0.0
    %688 = vmatprep.subr.mxu0 0.0
    %689 = vmatpush1.msra.mxu0 0.0
    %690 = vmatprep.subr.mxu0 0.0
    %691 = vmatpush1.msra.mxu0 0.0
    %692 = vmatprep.subr.mxu0 0.0
    %693 = vmatpush1.msra.mxu0 0.0
    %694 = vmatprep.subr.mxu0 0.0
    %695 = vmatpush1.msra.mxu0 0.0
    %696 = vmatprep.subr.mxu0 0.0
    %697 = vmatpush1.msra.mxu0 0.0
    %698 = vmatprep.subr.mxu0 0.0
    %699 = vmatpush1.msra.mxu0 0.0
    %700 = vmatprep.subr.mxu0 0.0
    %701 = vmatpush1.msra.mxu0 0.0
    %702 = vmatprep.subr.mxu0 0.0
    %703 = vmatpush1.msra.mxu0 0.0
    %704 = vmatprep.subr.mxu0 0.0
    %705 = vmatpush1.msra.mxu0 %v669
    %706 = vmatprep.subr.mxu0 0.0
    %707 = vmatpush2.msra.mxu0 0.0
    %708 = vmatprep.subr.mxu0 0.0
    %709 = vmatpush2.msra.mxu0 0.0
    %710 = vmatprep.subr.mxu0 0.0
    %711 = vmatpush2.msra.mxu0 0.0
    %712 = vmatprep.subr.mxu0 0.0
    %713 = vmatpush2.msra.mxu0 0.0
    %714 = vmatprep.subr.mxu0 0.0
    %715 = vmatpush2.msra.mxu0 0.0
    %716 = vmatprep.subr.mxu0 0.0
    %717 = vmatpush2.msra.mxu0 0.0
    %718 = vmatprep.subr.mxu0 0.0
    %719 = vmatpush2.msra.mxu0 0.0
    %720 = vmatprep.subr.mxu0 0.0
    %721 = vmatpush2.msra.mxu0 0.0
    %722 = vmatprep.subr.mxu0 0.0
    %723 = vmatpush2.msra.mxu0 0.0
    %724 = vmatprep.subr.mxu0 0.0
    %725 = vmatpush2.msra.mxu0 0.0
    %726 = vmatprep.subr.mxu0 0.0
    %727 = vmatpush2.msra.mxu0 0.0
    %728 = vmatprep.subr.mxu0 0.0
    %729 = vmatpush2.msra.mxu0 0.0
    %730 = vmatprep.subr.mxu0 0.0
    %731 = vmatpush2.msra.mxu0 0.0
    %732 = vmatprep.subr.mxu0 0.0
    %733 = vmatpush2.msra.mxu0 0.0
    %734 = vmatprep.subr.mxu0 0.0
    %735 = vmatpush2.msra.mxu0 0.0
    %736 = vmatprep.subr.mxu0 0.0
    %737 = vmatpush2.msra.mxu0 0.0
    %738 = vmatprep.mubr.f32.mxu0 0.0
    %739 = vmatmul.mubr.f32.gmra.mxu0 %v672
    %v740 = vpop.f32.mrf.mxu0
    %v741 = vadd.f32 0.0, %v740
    %v742 = vpop.f32.mrf.mxu0
    %743 = vdwg.mxu0
    %744 = vrot.lane.b32.xlu0 %v157, 56
    %v745 = vpop.permute.xlu0 %744
    %v748 = vsel %vm163, %v667, 0
    %750 = vmatprep.subr.mxu0 0.0
    %751 = vmatpush1.msra.mxu0 0.0
    %752 = vmatprep.subr.mxu0 0.0
    %753 = vmatpush1.msra.mxu0 0.0
    %754 = vmatprep.subr.mxu0 0.0
    %755 = vmatpush1.msra.mxu0 0.0
    %756 = vmatprep.subr.mxu0 0.0
    %757 = vmatpush1.msra.mxu0 0.0
    %758 = vmatprep.subr.mxu0 0.0
    %759 = vmatpush1.msra.mxu0 0.0
    %760 = vmatprep.subr.mxu0 0.0
    %761 = vmatpush1.msra.mxu0 0.0
    %762 = vmatprep.subr.mxu0 0.0
    %763 = vmatpush1.msra.mxu0 0.0
    %764 = vmatprep.subr.mxu0 0.0
    %765 = vmatpush1.msra.mxu0 0.0
    %766 = vmatprep.subr.mxu0 0.0
    %767 = vmatpush1.msra.mxu0 0.0
    %768 = vmatprep.subr.mxu0 0.0
    %769 = vmatpush1.msra.mxu0 0.0
    %770 = vmatprep.subr.mxu0 0.0
    %771 = vmatpush1.msra.mxu0 0.0
    %772 = vmatprep.subr.mxu0 0.0
    %773 = vmatpush1.msra.mxu0 0.0
    %774 = vmatprep.subr.mxu0 0.0
    %775 = vmatpush1.msra.mxu0 0.0
    %776 = vmatprep.subr.mxu0 0.0
    %777 = vmatpush1.msra.mxu0 0.0
    %778 = vmatprep.subr.mxu0 0.0
    %779 = vmatpush1.msra.mxu0 0.0
    %780 = vmatprep.subr.mxu0 0.0
    %781 = vmatpush1.msra.mxu0 %v745
    %782 = vmatprep.subr.mxu0 0.0
    %783 = vmatpush2.msra.mxu0 0.0
    %784 = vmatprep.subr.mxu0 0.0
    %785 = vmatpush2.msra.mxu0 0.0
    %786 = vmatprep.subr.mxu0 0.0
    %787 = vmatpush2.msra.mxu0 0.0
    %788 = vmatprep.subr.mxu0 0.0
    %789 = vmatpush2.msra.mxu0 0.0
    %790 = vmatprep.subr.mxu0 0.0
    %791 = vmatpush2.msra.mxu0 0.0
    %792 = vmatprep.subr.mxu0 0.0
    %793 = vmatpush2.msra.mxu0 0.0
    %794 = vmatprep.subr.mxu0 0.0
    %795 = vmatpush2.msra.mxu0 0.0
    %796 = vmatprep.subr.mxu0 0.0
    %797 = vmatpush2.msra.mxu0 0.0
    %798 = vmatprep.subr.mxu0 0.0
    %799 = vmatpush2.msra.mxu0 0.0
    %800 = vmatprep.subr.mxu0 0.0
    %801 = vmatpush2.msra.mxu0 0.0
    %802 = vmatprep.subr.mxu0 0.0
    %803 = vmatpush2.msra.mxu0 0.0
    %804 = vmatprep.subr.mxu0 0.0
    %805 = vmatpush2.msra.mxu0 0.0
    %806 = vmatprep.subr.mxu0 0.0
    %807 = vmatpush2.msra.mxu0 0.0
    %808 = vmatprep.subr.mxu0 0.0
    %809 = vmatpush2.msra.mxu0 0.0
    %810 = vmatprep.subr.mxu0 0.0
    %811 = vmatpush2.msra.mxu0 0.0
    %812 = vmatprep.subr.mxu0 0.0
    %813 = vmatpush2.msra.mxu0 0.0
    %814 = vmatprep.mubr.f32.mxu0 0.0
    %815 = vmatmul.mubr.f32.gmra.mxu0 %v748
    %v816 = vpop.f32.mrf.mxu0
    %v817 = vadd.f32 0.0, %v816
    %v818 = vpop.f32.mrf.mxu0
    %819 = vdwg.mxu0
    %v820 = vld [vmem:[#allocation7 + $0x8] sm:$0xff]
    %v822 = vsel %vm163, %v741, 0
    %v825 = vsel %vm163, %v817, 0
    %827 = vmatprep.subr.mxu0 0.0
    %828 = vmatpush1.msra.mxu0 0.0
    %829 = vmatprep.subr.mxu0 0.0
    %830 = vmatpush1.msra.mxu0 0.0
    %831 = vmatprep.subr.mxu0 0.0
    %832 = vmatpush1.msra.mxu0 0.0
    %833 = vmatprep.subr.mxu0 0.0
    %834 = vmatpush1.msra.mxu0 0.0
    %835 = vmatprep.subr.mxu0 0.0
    %836 = vmatpush1.msra.mxu0 0.0
    %837 = vmatprep.subr.mxu0 0.0
    %838 = vmatpush1.msra.mxu0 0.0
    %839 = vmatprep.subr.mxu0 0.0
    %840 = vmatpush1.msra.mxu0 0.0
    %841 = vmatprep.subr.mxu0 0.0
    %842 = vmatpush1.msra.mxu0 0.0
    %843 = vmatprep.subr.mxu0 0.0
    %844 = vmatpush1.msra.mxu0 0.0
    %845 = vmatprep.subr.mxu0 0.0
    %846 = vmatpush1.msra.mxu0 0.0
    %847 = vmatprep.subr.mxu0 0.0
    %848 = vmatpush1.msra.mxu0 0.0
    %849 = vmatprep.subr.mxu0 0.0
    %850 = vmatpush1.msra.mxu0 0.0
    %851 = vmatprep.subr.mxu0 0.0
    %852 = vmatpush1.msra.mxu0 0.0
    %853 = vmatprep.subr.mxu0 0.0
    %854 = vmatpush1.msra.mxu0 0.0
    %855 = vmatprep.subr.mxu0 0.0
    %856 = vmatpush1.msra.mxu0 0.0
    %857 = vmatprep.subr.mxu0 0.0
    %858 = vmatpush1.msra.mxu0 %v820
    %859 = vmatprep.subr.mxu0 0.0
    %860 = vmatpush2.msra.mxu0 0.0
    %861 = vmatprep.subr.mxu0 0.0
    %862 = vmatpush2.msra.mxu0 0.0
    %863 = vmatprep.subr.mxu0 0.0
    %864 = vmatpush2.msra.mxu0 0.0
    %865 = vmatprep.subr.mxu0 0.0
    %866 = vmatpush2.msra.mxu0 0.0
    %867 = vmatprep.subr.mxu0 0.0
    %868 = vmatpush2.msra.mxu0 0.0
    %869 = vmatprep.subr.mxu0 0.0
    %870 = vmatpush2.msra.mxu0 0.0
    %871 = vmatprep.subr.mxu0 0.0
    %872 = vmatpush2.msra.mxu0 0.0
    %873 = vmatprep.subr.mxu0 0.0
    %874 = vmatpush2.msra.mxu0 0.0
    %875 = vmatprep.subr.mxu0 0.0
    %876 = vmatpush2.msra.mxu0 0.0
    %877 = vmatprep.subr.mxu0 0.0
    %878 = vmatpush2.msra.mxu0 0.0
    %879 = vmatprep.subr.mxu0 0.0
    %880 = vmatpush2.msra.mxu0 0.0
    %881 = vmatprep.subr.mxu0 0.0
    %882 = vmatpush2.msra.mxu0 0.0
    %883 = vmatprep.subr.mxu0 0.0
    %884 = vmatpush2.msra.mxu0 0.0
    %885 = vmatprep.subr.mxu0 0.0
    %886 = vmatpush2.msra.mxu0 0.0
    %887 = vmatprep.subr.mxu0 0.0
    %888 = vmatpush2.msra.mxu0 0.0
    %889 = vmatprep.subr.mxu0 0.0
    %890 = vmatpush2.msra.mxu0 0.0
    %891 = vmatprep.mubr.f32.mxu0 0.0
    %892 = vmatmul.mubr.f32.gmra.mxu0 %v822
    %v893 = vpop.f32.mrf.mxu0
    %v894 = vadd.f32 0.0, %v893
    %v895 = vpop.f32.mrf.mxu0
    %896 = vmatprep.mubr.f32.mxu0 0.0
    %897 = vmatmul.mubr.f32.gmra.mxu0 %v825
    %v898 = vpop.f32.mrf.mxu0
    %v899 = vadd.f32 0.0, %v898
    %v900 = vpop.f32.mrf.mxu0
    %901 = vdwg.mxu0
    %v903 = vsel %vm163, %v410, 0
    %v906 = vsel %vm163, %v486, 0
    %908 = vmatprep.subr.mxu0 0.0
    %909 = vmatpush1.msra.mxu0 0.0
    %910 = vmatprep.subr.mxu0 0.0
    %911 = vmatpush1.msra.mxu0 0.0
    %912 = vmatprep.subr.mxu0 0.0
    %913 = vmatpush1.msra.mxu0 0.0
    %914 = vmatprep.subr.mxu0 0.0
    %915 = vmatpush1.msra.mxu0 0.0
    %916 = vmatprep.subr.mxu0 0.0
    %917 = vmatpush1.msra.mxu0 0.0
    %918 = vmatprep.subr.mxu0 0.0
    %919 = vmatpush1.msra.mxu0 0.0
    %920 = vmatprep.subr.mxu0 0.0
    %921 = vmatpush1.msra.mxu0 0.0
    %922 = vmatprep.subr.mxu0 0.0
    %923 = vmatpush1.msra.mxu0 0.0
    %924 = vmatprep.subr.mxu0 0.0
    %925 = vmatpush1.msra.mxu0 0.0
    %926 = vmatprep.subr.mxu0 0.0
    %927 = vmatpush1.msra.mxu0 0.0
    %928 = vmatprep.subr.mxu0 0.0
    %929 = vmatpush1.msra.mxu0 0.0
    %930 = vmatprep.subr.mxu0 0.0
    %931 = vmatpush1.msra.mxu0 0.0
    %932 = vmatprep.subr.mxu0 0.0
    %933 = vmatpush1.msra.mxu0 0.0
    %934 = vmatprep.subr.mxu0 0.0
    %935 = vmatpush1.msra.mxu0 0.0
    %936 = vmatprep.subr.mxu0 0.0
    %937 = vmatpush1.msra.mxu0 0.0
    %938 = vmatprep.subr.mxu0 0.0
    %939 = vmatpush1.msra.mxu0 %v489
    %940 = vmatprep.subr.mxu0 0.0
    %941 = vmatpush2.msra.mxu0 0.0
    %942 = vmatprep.subr.mxu0 0.0
    %943 = vmatpush2.msra.mxu0 0.0
    %944 = vmatprep.subr.mxu0 0.0
    %945 = vmatpush2.msra.mxu0 0.0
    %946 = vmatprep.subr.mxu0 0.0
    %947 = vmatpush2.msra.mxu0 0.0
    %948 = vmatprep.subr.mxu0 0.0
    %949 = vmatpush2.msra.mxu0 0.0
    %950 = vmatprep.subr.mxu0 0.0
    %951 = vmatpush2.msra.mxu0 0.0
    %952 = vmatprep.subr.mxu0 0.0
    %953 = vmatpush2.msra.mxu0 0.0
    %954 = vmatprep.subr.mxu0 0.0
    %955 = vmatpush2.msra.mxu0 0.0
    %956 = vmatprep.subr.mxu0 0.0
    %957 = vmatpush2.msra.mxu0 0.0
    %958 = vmatprep.subr.mxu0 0.0
    %959 = vmatpush2.msra.mxu0 0.0
    %960 = vmatprep.subr.mxu0 0.0
    %961 = vmatpush2.msra.mxu0 0.0
    %962 = vmatprep.subr.mxu0 0.0
    %963 = vmatpush2.msra.mxu0 0.0
    %964 = vmatprep.subr.mxu0 0.0
    %965 = vmatpush2.msra.mxu0 0.0
    %966 = vmatprep.subr.mxu0 0.0
    %967 = vmatpush2.msra.mxu0 0.0
    %968 = vmatprep.subr.mxu0 0.0
    %969 = vmatpush2.msra.mxu0 0.0
    %970 = vmatprep.subr.mxu0 0.0
    %971 = vmatpush2.msra.mxu0 0.0
    %972 = vmatprep.mubr.f32.mxu0 0.0
    %973 = vmatmul.mubr.f32.gmra.mxu0 %v903
    %v974 = vpop.f32.mrf.mxu0
    %v975 = vadd.f32 %v894, %v974
    %v976 = vpop.f32.mrf.mxu0
    %977 = vmatprep.mubr.f32.mxu0 0.0
    %978 = vmatmul.mubr.f32.gmra.mxu0 %v906
    %v979 = vpop.f32.mrf.mxu0
    %v980 = vadd.f32 %v899, %v979
    %v981 = vpop.f32.mrf.mxu0
    %982 = vdwg.mxu0
    %983 = vrot.lane.b32.xlu0 %v154, 112
    %v984 = vpop.permute.xlu0 %983
    %985 = vrot.lane.b32.xlu0 %v154, 80
    %v986 = vpop.permute.xlu0 %985
    %v987 = vsel %vm163, %v984, 0
    %v989 = vsel %vm163, %v986, 0
    %991 = vmatprep.subr.mxu0 0.0
    %992 = vmatpush1.xpose.msra.mxu0 0.0
    %993 = vmatprep.subr.mxu0 0.0
    %994 = vmatpush1.xpose.msra.mxu0 0.0
    %995 = vmatprep.subr.mxu0 0.0
    %996 = vmatpush1.xpose.msra.mxu0 0.0
    %997 = vmatprep.subr.mxu0 0.0
    %998 = vmatpush1.xpose.msra.mxu0 0.0
    %999 = vmatprep.subr.mxu0 0.0
    %1000 = vmatpush1.xpose.msra.mxu0 0.0
    %1001 = vmatprep.subr.mxu0 0.0
    %1002 = vmatpush1.xpose.msra.mxu0 0.0
    %1003 = vmatprep.subr.mxu0 0.0
    %1004 = vmatpush1.xpose.msra.mxu0 0.0
    %1005 = vmatprep.subr.mxu0 0.0
    %1006 = vmatpush1.xpose.msra.mxu0 0.0
    %1007 = vmatprep.subr.mxu0 0.0
    %1008 = vmatpush1.xpose.msra.mxu0 0.0
    %1009 = vmatprep.subr.mxu0 0.0
    %1010 = vmatpush1.xpose.msra.mxu0 0.0
    %1011 = vmatprep.subr.mxu0 0.0
    %1012 = vmatpush1.xpose.msra.mxu0 0.0
    %1013 = vmatprep.subr.mxu0 0.0
    %1014 = vmatpush1.xpose.msra.mxu0 0.0
    %1015 = vmatprep.subr.mxu0 0.0
    %1016 = vmatpush1.xpose.msra.mxu0 0.0
    %1017 = vmatprep.subr.mxu0 0.0
    %1018 = vmatpush1.xpose.msra.mxu0 0.0
    %1019 = vmatprep.subr.mxu0 0.0
    %1020 = vmatpush1.xpose.msra.mxu0 0.0
    %1021 = vmatprep.subr.mxu0 0.0
    %1022 = vmatpush1.xpose.msra.mxu0 %v989
    %1023 = vmatprep.subr.mxu0 0.0
    %1024 = vmatpush2.xpose.msra.mxu0 0.0
    %1025 = vmatprep.subr.mxu0 0.0
    %1026 = vmatpush2.xpose.msra.mxu0 0.0
    %1027 = vmatprep.subr.mxu0 0.0
    %1028 = vmatpush2.xpose.msra.mxu0 0.0
    %1029 = vmatprep.subr.mxu0 0.0
    %1030 = vmatpush2.xpose.msra.mxu0 0.0
    %1031 = vmatprep.subr.mxu0 0.0
    %1032 = vmatpush2.xpose.msra.mxu0 0.0
    %1033 = vmatprep.subr.mxu0 0.0
    %1034 = vmatpush2.xpose.msra.mxu0 0.0
    %1035 = vmatprep.subr.mxu0 0.0
    %1036 = vmatpush2.xpose.msra.mxu0 0.0
    %1037 = vmatprep.subr.mxu0 0.0
    %1038 = vmatpush2.xpose.msra.mxu0 0.0
    %1039 = vmatprep.subr.mxu0 0.0
    %1040 = vmatpush2.xpose.msra.mxu0 0.0
    %1041 = vmatprep.subr.mxu0 0.0
    %1042 = vmatpush2.xpose.msra.mxu0 0.0
    %1043 = vmatprep.subr.mxu0 0.0
    %1044 = vmatpush2.xpose.msra.mxu0 0.0
    %1045 = vmatprep.subr.mxu0 0.0
    %1046 = vmatpush2.xpose.msra.mxu0 0.0
    %1047 = vmatprep.subr.mxu0 0.0
    %1048 = vmatpush2.xpose.msra.mxu0 0.0
    %1049 = vmatprep.subr.mxu0 0.0
    %1050 = vmatpush2.xpose.msra.mxu0 0.0
    %1051 = vmatprep.subr.mxu0 0.0
    %1052 = vmatpush2.xpose.msra.mxu0 0.0
    %1053 = vmatprep.subr.mxu0 0.0
    %1054 = vmatpush2.xpose.msra.mxu0 0.0
    %1055 = vmatprep.mubr.f32.mxu0 0.0
    %1056 = vmatmul.mubr.f32.gmra.mxu0 %v987
    %v1057 = vpop.f32.mrf.mxu0
    %v1058 = vadd.f32 0.0, %v1057
    %v1059 = vpop.f32.mrf.mxu0
    %1060 = vdwg.mxu0
    %1061 = vrot.lane.b32.xlu0 %v157, 112
    %v1062 = vpop.permute.xlu0 %1061
    %1063 = vrot.lane.b32.xlu0 %v157, 80
    %v1064 = vpop.permute.xlu0 %1063
    %v1065 = vsel %vm163, %v1062, 0
    %v1067 = vsel %vm163, %v1064, 0
    %1069 = vmatprep.subr.mxu0 0.0
    %1070 = vmatpush1.xpose.msra.mxu0 0.0
    %1071 = vmatprep.subr.mxu0 0.0
    %1072 = vmatpush1.xpose.msra.mxu0 0.0
    %1073 = vmatprep.subr.mxu0 0.0
    %1074 = vmatpush1.xpose.msra.mxu0 0.0
    %1075 = vmatprep.subr.mxu0 0.0
    %1076 = vmatpush1.xpose.msra.mxu0 0.0
    %1077 = vmatprep.subr.mxu0 0.0
    %1078 = vmatpush1.xpose.msra.mxu0 0.0
    %1079 = vmatprep.subr.mxu0 0.0
    %1080 = vmatpush1.xpose.msra.mxu0 0.0
    %1081 = vmatprep.subr.mxu0 0.0
    %1082 = vmatpush1.xpose.msra.mxu0 0.0
    %1083 = vmatprep.subr.mxu0 0.0
    %1084 = vmatpush1.xpose.msra.mxu0 0.0
    %1085 = vmatprep.subr.mxu0 0.0
    %1086 = vmatpush1.xpose.msra.mxu0 0.0
    %1087 = vmatprep.subr.mxu0 0.0
    %1088 = vmatpush1.xpose.msra.mxu0 0.0
    %1089 = vmatprep.subr.mxu0 0.0
    %1090 = vmatpush1.xpose.msra.mxu0 0.0
    %1091 = vmatprep.subr.mxu0 0.0
    %1092 = vmatpush1.xpose.msra.mxu0 0.0
    %1093 = vmatprep.subr.mxu0 0.0
    %1094 = vmatpush1.xpose.msra.mxu0 0.0
    %1095 = vmatprep.subr.mxu0 0.0
    %1096 = vmatpush1.xpose.msra.mxu0 0.0
    %1097 = vmatprep.subr.mxu0 0.0
    %1098 = vmatpush1.xpose.msra.mxu0 0.0
    %1099 = vmatprep.subr.mxu0 0.0
    %1100 = vmatpush1.xpose.msra.mxu0 %v1067
    %1101 = vmatprep.subr.mxu0 0.0
    %1102 = vmatpush2.xpose.msra.mxu0 0.0
    %1103 = vmatprep.subr.mxu0 0.0
    %1104 = vmatpush2.xpose.msra.mxu0 0.0
    %1105 = vmatprep.subr.mxu0 0.0
    %1106 = vmatpush2.xpose.msra.mxu0 0.0
    %1107 = vmatprep.subr.mxu0 0.0
    %1108 = vmatpush2.xpose.msra.mxu0 0.0
    %1109 = vmatprep.subr.mxu0 0.0
    %1110 = vmatpush2.xpose.msra.mxu0 0.0
    %1111 = vmatprep.subr.mxu0 0.0
    %1112 = vmatpush2.xpose.msra.mxu0 0.0
    %1113 = vmatprep.subr.mxu0 0.0
    %1114 = vmatpush2.xpose.msra.mxu0 0.0
    %1115 = vmatprep.subr.mxu0 0.0
    %1116 = vmatpush2.xpose.msra.mxu0 0.0
    %1117 = vmatprep.subr.mxu0 0.0
    %1118 = vmatpush2.xpose.msra.mxu0 0.0
    %1119 = vmatprep.subr.mxu0 0.0
    %1120 = vmatpush2.xpose.msra.mxu0 0.0
    %1121 = vmatprep.subr.mxu0 0.0
    %1122 = vmatpush2.xpose.msra.mxu0 0.0
    %1123 = vmatprep.subr.mxu0 0.0
    %1124 = vmatpush2.xpose.msra.mxu0 0.0
    %1125 = vmatprep.subr.mxu0 0.0
    %1126 = vmatpush2.xpose.msra.mxu0 0.0
    %1127 = vmatprep.subr.mxu0 0.0
    %1128 = vmatpush2.xpose.msra.mxu0 0.0
    %1129 = vmatprep.subr.mxu0 0.0
    %1130 = vmatpush2.xpose.msra.mxu0 0.0
    %1131 = vmatprep.subr.mxu0 0.0
    %1132 = vmatpush2.xpose.msra.mxu0 0.0
    %1133 = vmatprep.mubr.f32.mxu0 0.0
    %1134 = vmatmul.mubr.f32.gmra.mxu0 %v1065
    %v1135 = vpop.f32.mrf.mxu0
    %v1136 = vadd.f32 0.0, %v1135
    %v1137 = vpop.f32.mrf.mxu0
    %1138 = vdwg.mxu0
    %v1139 = vsel %vm163, %v1058, -inf
    %1140 = vmax.xlane.f32.xlu0 %v1139
    %v1141 = vpop.xlane.xlu0 %1140
    %v1142 = vsel %vm163, %v1136, -inf
    %1143 = vmax.xlane.f32.xlu0 %v1142
    %v1144 = vpop.xlane.xlu0 %1143
    %v1145 = vsub.f32 %v1058, %v1141
    %v1146 = vsub.f32 %v1136, %v1144
    %v1147 = vmul.f32 %v1145, 1.442695
    %v1148 = vpow.pop %v1147
    %v1149 = vmul.f32 %v1146, 1.442695
    %v1150 = vpow.pop %v1149
    %v1151 = vsel %vm163, %v1148, 0.0
    %1152 = vadd.xlane.f32.xlu0 %v1151
    %v1153 = vpop.xlane.xlu0 %1152
    %v1154 = vsel %vm163, %v1150, 0.0
    %1155 = vadd.xlane.f32.xlu0 %v1154
    %v1156 = vpop.xlane.xlu0 %1155
    %v1157 = vrcp.pop %v1153
    %v1158 = vrcp.pop %v1156
    %v1159 = vmul.f32 %v1148, %v1157
    %v1160 = vmul.f32 %v1150, %v1158
    %1161 = vrot.lane.b32.xlu0 %v154, 48
    %v1162 = vpop.permute.xlu0 %1161
    %v1165 = vsel %vm163, %v1159, 0
    %1167 = vmatprep.subr.mxu0 0.0
    %1168 = vmatpush1.msra.mxu0 0.0
    %1169 = vmatprep.subr.mxu0 0.0
    %1170 = vmatpush1.msra.mxu0 0.0
    %1171 = vmatprep.subr.mxu0 0.0
    %1172 = vmatpush1.msra.mxu0 0.0
    %1173 = vmatprep.subr.mxu0 0.0
    %1174 = vmatpush1.msra.mxu0 0.0
    %1175 = vmatprep.subr.mxu0 0.0
    %1176 = vmatpush1.msra.mxu0 0.0
    %1177 = vmatprep.subr.mxu0 0.0
    %1178 = vmatpush1.msra.mxu0 0.0
    %1179 = vmatprep.subr.mxu0 0.0
    %1180 = vmatpush1.msra.mxu0 0.0
    %1181 = vmatprep.subr.mxu0 0.0
    %1182 = vmatpush1.msra.mxu0 0.0
    %1183 = vmatprep.subr.mxu0 0.0
    %1184 = vmatpush1.msra.mxu0 0.0
    %1185 = vmatprep.subr.mxu0 0.0
    %1186 = vmatpush1.msra.mxu0 0.0
    %1187 = vmatprep.subr.mxu0 0.0
    %1188 = vmatpush1.msra.mxu0 0.0
    %1189 = vmatprep.subr.mxu0 0.0
    %1190 = vmatpush1.msra.mxu0 0.0
    %1191 = vmatprep.subr.mxu0 0.0
    %1192 = vmatpush1.msra.mxu0 0.0
    %1193 = vmatprep.subr.mxu0 0.0
    %1194 = vmatpush1.msra.mxu0 0.0
    %1195 = vmatprep.subr.mxu0 0.0
    %1196 = vmatpush1.msra.mxu0 0.0
    %1197 = vmatprep.subr.mxu0 0.0
    %1198 = vmatpush1.msra.mxu0 %v1162
    %1199 = vmatprep.subr.mxu0 0.0
    %1200 = vmatpush2.msra.mxu0 0.0
    %1201 = vmatprep.subr.mxu0 0.0
    %1202 = vmatpush2.msra.mxu0 0.0
    %1203 = vmatprep.subr.mxu0 0.0
    %1204 = vmatpush2.msra.mxu0 0.0
    %1205 = vmatprep.subr.mxu0 0.0
    %1206 = vmatpush2.msra.mxu0 0.0
    %1207 = vmatprep.subr.mxu0 0.0
    %1208 = vmatpush2.msra.mxu0 0.0
    %1209 = vmatprep.subr.mxu0 0.0
    %1210 = vmatpush2.msra.mxu0 0.0
    %1211 = vmatprep.subr.mxu0 0.0
    %1212 = vmatpush2.msra.mxu0 0.0
    %1213 = vmatprep.subr.mxu0 0.0
    %1214 = vmatpush2.msra.mxu0 0.0
    %1215 = vmatprep.subr.mxu0 0.0
    %1216 = vmatpush2.msra.mxu0 0.0
    %1217 = vmatprep.subr.mxu0 0.0
    %1218 = vmatpush2.msra.mxu0 0.0
    %1219 = vmatprep.subr.mxu0 0.0
    %1220 = vmatpush2.msra.mxu0 0.0
    %1221 = vmatprep.subr.mxu0 0.0
    %1222 = vmatpush2.msra.mxu0 0.0
    %1223 = vmatprep.subr.mxu0 0.0
    %1224 = vmatpush2.msra.mxu0 0.0
    %1225 = vmatprep.subr.mxu0 0.0
    %1226 = vmatpush2.msra.mxu0 0.0
    %1227 = vmatprep.subr.mxu0 0.0
    %1228 = vmatpush2.msra.mxu0 0.0
    %1229 = vmatprep.subr.mxu0 0.0
    %1230 = vmatpush2.msra.mxu0 0.0
    %1231 = vmatprep.mubr.f32.mxu0 0.0
    %1232 = vmatmul.mubr.f32.gmra.mxu0 %v1165
    %v1233 = vpop.f32.mrf.mxu0
    %v1234 = vadd.f32 0.0, %v1233
    %v1235 = vpop.f32.mrf.mxu0
    %1236 = vdwg.mxu0
    %1237 = vrot.lane.b32.xlu0 %v157, 48
    %v1238 = vpop.permute.xlu0 %1237
    %v1241 = vsel %vm163, %v1160, 0
    %1243 = vmatprep.subr.mxu0 0.0
    %1244 = vmatpush1.msra.mxu0 0.0
    %1245 = vmatprep.subr.mxu0 0.0
    %1246 = vmatpush1.msra.mxu0 0.0
    %1247 = vmatprep.subr.mxu0 0.0
    %1248 = vmatpush1.msra.mxu0 0.0
    %1249 = vmatprep.subr.mxu0 0.0
    %1250 = vmatpush1.msra.mxu0 0.0
    %1251 = vmatprep.subr.mxu0 0.0
    %1252 = vmatpush1.msra.mxu0 0.0
    %1253 = vmatprep.subr.mxu0 0.0
    %1254 = vmatpush1.msra.mxu0 0.0
    %1255 = vmatprep.subr.mxu0 0.0
    %1256 = vmatpush1.msra.mxu0 0.0
    %1257 = vmatprep.subr.mxu0 0.0
    %1258 = vmatpush1.msra.mxu0 0.0
    %1259 = vmatprep.subr.mxu0 0.0
    %1260 = vmatpush1.msra.mxu0 0.0
    %1261 = vmatprep.subr.mxu0 0.0
    %1262 = vmatpush1.msra.mxu0 0.0
    %1263 = vmatprep.subr.mxu0 0.0
    %1264 = vmatpush1.msra.mxu0 0.0
    %1265 = vmatprep.subr.mxu0 0.0
    %1266 = vmatpush1.msra.mxu0 0.0
    %1267 = vmatprep.subr.mxu0 0.0
    %1268 = vmatpush1.msra.mxu0 0.0
    %1269 = vmatprep.subr.mxu0 0.0
    %1270 = vmatpush1.msra.mxu0 0.0
    %1271 = vmatprep.subr.mxu0 0.0
    %1272 = vmatpush1.msra.mxu0 0.0
    %1273 = vmatprep.subr.mxu0 0.0
    %1274 = vmatpush1.msra.mxu0 %v1238
    %1275 = vmatprep.subr.mxu0 0.0
    %1276 = vmatpush2.msra.mxu0 0.0
    %1277 = vmatprep.subr.mxu0 0.0
    %1278 = vmatpush2.msra.mxu0 0.0
    %1279 = vmatprep.subr.mxu0 0.0
    %1280 = vmatpush2.msra.mxu0 0.0
    %1281 = vmatprep.subr.mxu0 0.0
    %1282 = vmatpush2.msra.mxu0 0.0
    %1283 = vmatprep.subr.mxu0 0.0
    %1284 = vmatpush2.msra.mxu0 0.0
    %1285 = vmatprep.subr.mxu0 0.0
    %1286 = vmatpush2.msra.mxu0 0.0
    %1287 = vmatprep.subr.mxu0 0.0
    %1288 = vmatpush2.msra.mxu0 0.0
    %1289 = vmatprep.subr.mxu0 0.0
    %1290 = vmatpush2.msra.mxu0 0.0
    %1291 = vmatprep.subr.mxu0 0.0
    %1292 = vmatpush2.msra.mxu0 0.0
    %1293 = vmatprep.subr.mxu0 0.0
    %1294 = vmatpush2.msra.mxu0 0.0
    %1295 = vmatprep.subr.mxu0 0.0
    %1296 = vmatpush2.msra.mxu0 0.0
    %1297 = vmatprep.subr.mxu0 0.0
    %1298 = vmatpush2.msra.mxu0 0.0
    %1299 = vmatprep.subr.mxu0 0.0
    %1300 = vmatpush2.msra.mxu0 0.0
    %1301 = vmatprep.subr.mxu0 0.0
    %1302 = vmatpush2.msra.mxu0 0.0
    %1303 = vmatprep.subr.mxu0 0.0
    %1304 = vmatpush2.msra.mxu0 0.0
    %1305 = vmatprep.subr.mxu0 0.0
    %1306 = vmatpush2.msra.mxu0 0.0
    %1307 = vmatprep.mubr.f32.mxu0 0.0
    %1308 = vmatmul.mubr.f32.gmra.mxu0 %v1241
    %v1309 = vpop.f32.mrf.mxu0
    %v1310 = vadd.f32 0.0, %v1309
    %v1311 = vpop.f32.mrf.mxu0
    %1312 = vdwg.mxu0
    %v1313 = vld [vmem:[#allocation7 + $0x10] sm:$0xff]
    %v1315 = vsel %vm163, %v1234, 0
    %v1318 = vsel %vm163, %v1310, 0
    %1320 = vmatprep.subr.mxu0 0.0
    %1321 = vmatpush1.msra.mxu0 0.0
    %1322 = vmatprep.subr.mxu0 0.0
    %1323 = vmatpush1.msra.mxu0 0.0
    %1324 = vmatprep.subr.mxu0 0.0
    %1325 = vmatpush1.msra.mxu0 0.0
    %1326 = vmatprep.subr.mxu0 0.0
    %1327 = vmatpush1.msra.mxu0 0.0
    %1328 = vmatprep.subr.mxu0 0.0
    %1329 = vmatpush1.msra.mxu0 0.0
    %1330 = vmatprep.subr.mxu0 0.0
    %1331 = vmatpush1.msra.mxu0 0.0
    %1332 = vmatprep.subr.mxu0 0.0
    %1333 = vmatpush1.msra.mxu0 0.0
    %1334 = vmatprep.subr.mxu0 0.0
    %1335 = vmatpush1.msra.mxu0 0.0
    %1336 = vmatprep.subr.mxu0 0.0
    %1337 = vmatpush1.msra.mxu0 0.0
    %1338 = vmatprep.subr.mxu0 0.0
    %1339 = vmatpush1.msra.mxu0 0.0
    %1340 = vmatprep.subr.mxu0 0.0
    %1341 = vmatpush1.msra.mxu0 0.0
    %1342 = vmatprep.subr.mxu0 0.0
    %1343 = vmatpush1.msra.mxu0 0.0
    %1344 = vmatprep.subr.mxu0 0.0
    %1345 = vmatpush1.msra.mxu0 0.0
    %1346 = vmatprep.subr.mxu0 0.0
    %1347 = vmatpush1.msra.mxu0 0.0
    %1348 = vmatprep.subr.mxu0 0.0
    %1349 = vmatpush1.msra.mxu0 0.0
    %1350 = vmatprep.subr.mxu0 0.0
    %1351 = vmatpush1.msra.mxu0 %v1313
    %1352 = vmatprep.subr.mxu0 0.0
    %1353 = vmatpush2.msra.mxu0 0.0
    %1354 = vmatprep.subr.mxu0 0.0
    %1355 = vmatpush2.msra.mxu0 0.0
    %1356 = vmatprep.subr.mxu0 0.0
    %1357 = vmatpush2.msra.mxu0 0.0
    %1358 = vmatprep.subr.mxu0 0.0
    %1359 = vmatpush2.msra.mxu0 0.0
    %1360 = vmatprep.subr.mxu0 0.0
    %1361 = vmatpush2.msra.mxu0 0.0
    %1362 = vmatprep.subr.mxu0 0.0
    %1363 = vmatpush2.msra.mxu0 0.0
    %1364 = vmatprep.subr.mxu0 0.0
    %1365 = vmatpush2.msra.mxu0 0.0
    %1366 = vmatprep.subr.mxu0 0.0
    %1367 = vmatpush2.msra.mxu0 0.0
    %1368 = vmatprep.subr.mxu0 0.0
    %1369 = vmatpush2.msra.mxu0 0.0
    %1370 = vmatprep.subr.mxu0 0.0
    %1371 = vmatpush2.msra.mxu0 0.0
    %1372 = vmatprep.subr.mxu0 0.0
    %1373 = vmatpush2.msra.mxu0 0.0
    %1374 = vmatprep.subr.mxu0 0.0
    %1375 = vmatpush2.msra.mxu0 0.0
    %1376 = vmatprep.subr.mxu0 0.0
    %1377 = vmatpush2.msra.mxu0 0.0
    %1378 = vmatprep.subr.mxu0 0.0
    %1379 = vmatpush2.msra.mxu0 0.0
    %1380 = vmatprep.subr.mxu0 0.0
    %1381 = vmatpush2.msra.mxu0 0.0
    %1382 = vmatprep.subr.mxu0 0.0
    %1383 = vmatpush2.msra.mxu0 0.0
    %1384 = vmatprep.mubr.f32.mxu0 0.0
    %1385 = vmatmul.mubr.f32.gmra.mxu0 %v1315
    %v1386 = vpop.f32.mrf.mxu0
    %v1387 = vadd.f32 0.0, %v1386
    %v1388 = vpop.f32.mrf.mxu0
    %1389 = vmatprep.mubr.f32.mxu0 0.0
    %1390 = vmatmul.mubr.f32.gmra.mxu0 %v1318
    %v1391 = vpop.f32.mrf.mxu0
    %v1392 = vadd.f32 0.0, %v1391
    %v1393 = vpop.f32.mrf.mxu0
    %1394 = vdwg.mxu0
    %v1395 = vadd.f32 %v975, %v1387
    %v1396 = vadd.f32 %v980, %v1392
    %1397 = vrot.lane.b32.xlu0 %v154, 104
    %v1398 = vpop.permute.xlu0 %1397
    %1399 = vrot.lane.b32.xlu0 %v154, 72
    %v1400 = vpop.permute.xlu0 %1399
    %v1401 = vsel %vm163, %v1398, 0
    %v1403 = vsel %vm163, %v1400, 0
    %1405 = vmatprep.subr.mxu0 0.0
    %1406 = vmatpush1.xpose.msra.mxu0 0.0
    %1407 = vmatprep.subr.mxu0 0.0
    %1408 = vmatpush1.xpose.msra.mxu0 0.0
    %1409 = vmatprep.subr.mxu0 0.0
    %1410 = vmatpush1.xpose.msra.mxu0 0.0
    %1411 = vmatprep.subr.mxu0 0.0
    %1412 = vmatpush1.xpose.msra.mxu0 0.0
    %1413 = vmatprep.subr.mxu0 0.0
    %1414 = vmatpush1.xpose.msra.mxu0 0.0
    %1415 = vmatprep.subr.mxu0 0.0
    %1416 = vmatpush1.xpose.msra.mxu0 0.0
    %1417 = vmatprep.subr.mxu0 0.0
    %1418 = vmatpush1.xpose.msra.mxu0 0.0
    %1419 = vmatprep.subr.mxu0 0.0
    %1420 = vmatpush1.xpose.msra.mxu0 0.0
    %1421 = vmatprep.subr.mxu0 0.0
    %1422 = vmatpush1.xpose.msra.mxu0 0.0
    %1423 = vmatprep.subr.mxu0 0.0
    %1424 = vmatpush1.xpose.msra.mxu0 0.0
    %1425 = vmatprep.subr.mxu0 0.0
    %1426 = vmatpush1.xpose.msra.mxu0 0.0
    %1427 = vmatprep.subr.mxu0 0.0
    %1428 = vmatpush1.xpose.msra.mxu0 0.0
    %1429 = vmatprep.subr.mxu0 0.0
    %1430 = vmatpush1.xpose.msra.mxu0 0.0
    %1431 = vmatprep.subr.mxu0 0.0
    %1432 = vmatpush1.xpose.msra.mxu0 0.0
    %1433 = vmatprep.subr.mxu0 0.0
    %1434 = vmatpush1.xpose.msra.mxu0 0.0
    %1435 = vmatprep.subr.mxu0 0.0
    %1436 = vmatpush1.xpose.msra.mxu0 %v1403
    %1437 = vmatprep.subr.mxu0 0.0
    %1438 = vmatpush2.xpose.msra.mxu0 0.0
    %1439 = vmatprep.subr.mxu0 0.0
    %1440 = vmatpush2.xpose.msra.mxu0 0.0
    %1441 = vmatprep.subr.mxu0 0.0
    %1442 = vmatpush2.xpose.msra.mxu0 0.0
    %1443 = vmatprep.subr.mxu0 0.0
    %1444 = vmatpush2.xpose.msra.mxu0 0.0
    %1445 = vmatprep.subr.mxu0 0.0
    %1446 = vmatpush2.xpose.msra.mxu0 0.0
    %1447 = vmatprep.subr.mxu0 0.0
    %1448 = vmatpush2.xpose.msra.mxu0 0.0
    %1449 = vmatprep.subr.mxu0 0.0
    %1450 = vmatpush2.xpose.msra.mxu0 0.0
    %1451 = vmatprep.subr.mxu0 0.0
    %1452 = vmatpush2.xpose.msra.mxu0 0.0
    %1453 = vmatprep.subr.mxu0 0.0
    %1454 = vmatpush2.xpose.msra.mxu0 0.0
    %1455 = vmatprep.subr.mxu0 0.0
    %1456 = vmatpush2.xpose.msra.mxu0 0.0
    %1457 = vmatprep.subr.mxu0 0.0
    %1458 = vmatpush2.xpose.msra.mxu0 0.0
    %1459 = vmatprep.subr.mxu0 0.0
    %1460 = vmatpush2.xpose.msra.mxu0 0.0
    %1461 = vmatprep.subr.mxu0 0.0
    %1462 = vmatpush2.xpose.msra.mxu0 0.0
    %1463 = vmatprep.subr.mxu0 0.0
    %1464 = vmatpush2.xpose.msra.mxu0 0.0
    %1465 = vmatprep.subr.mxu0 0.0
    %1466 = vmatpush2.xpose.msra.mxu0 0.0
    %1467 = vmatprep.subr.mxu0 0.0
    %1468 = vmatpush2.xpose.msra.mxu0 0.0
    %1469 = vmatprep.mubr.f32.mxu0 0.0
    %1470 = vmatmul.mubr.f32.gmra.mxu0 %v1401
    %v1471 = vpop.f32.mrf.mxu0
    %v1472 = vadd.f32 0.0, %v1471
    %v1473 = vpop.f32.mrf.mxu0
    %1474 = vdwg.mxu0
    %1475 = vrot.lane.b32.xlu0 %v157, 104
    %v1476 = vpop.permute.xlu0 %1475
    %1477 = vrot.lane.b32.xlu0 %v157, 72
    %v1478 = vpop.permute.xlu0 %1477
    %v1479 = vsel %vm163, %v1476, 0
    %v1481 = vsel %vm163, %v1478, 0
    %1483 = vmatprep.subr.mxu0 0.0
    %1484 = vmatpush1.xpose.msra.mxu0 0.0
    %1485 = vmatprep.subr.mxu0 0.0
    %1486 = vmatpush1.xpose.msra.mxu0 0.0
    %1487 = vmatprep.subr.mxu0 0.0
    %1488 = vmatpush1.xpose.msra.mxu0 0.0
    %1489 = vmatprep.subr.mxu0 0.0
    %1490 = vmatpush1.xpose.msra.mxu0 0.0
    %1491 = vmatprep.subr.mxu0 0.0
    %1492 = vmatpush1.xpose.msra.mxu0 0.0
    %1493 = vmatprep.subr.mxu0 0.0
    %1494 = vmatpush1.xpose.msra.mxu0 0.0
    %1495 = vmatprep.subr.mxu0 0.0
    %1496 = vmatpush1.xpose.msra.mxu0 0.0
    %1497 = vmatprep.subr.mxu0 0.0
    %1498 = vmatpush1.xpose.msra.mxu0 0.0
    %1499 = vmatprep.subr.mxu0 0.0
    %1500 = vmatpush1.xpose.msra.mxu0 0.0
    %1501 = vmatprep.subr.mxu0 0.0
    %1502 = vmatpush1.xpose.msra.mxu0 0.0
    %1503 = vmatprep.subr.mxu0 0.0
    %1504 = vmatpush1.xpose.msra.mxu0 0.0
    %1505 = vmatprep.subr.mxu0 0.0
    %1506 = vmatpush1.xpose.msra.mxu0 0.0
    %1507 = vmatprep.subr.mxu0 0.0
    %1508 = vmatpush1.xpose.msra.mxu0 0.0
    %1509 = vmatprep.subr.mxu0 0.0
    %1510 = vmatpush1.xpose.msra.mxu0 0.0
    %1511 = vmatprep.subr.mxu0 0.0
    %1512 = vmatpush1.xpose.msra.mxu0 0.0
    %1513 = vmatprep.subr.mxu0 0.0
    %1514 = vmatpush1.xpose.msra.mxu0 %v1481
    %1515 = vmatprep.subr.mxu0 0.0
    %1516 = vmatpush2.xpose.msra.mxu0 0.0
    %1517 = vmatprep.subr.mxu0 0.0
    %1518 = vmatpush2.xpose.msra.mxu0 0.0
    %1519 = vmatprep.subr.mxu0 0.0
    %1520 = vmatpush2.xpose.msra.mxu0 0.0
    %1521 = vmatprep.subr.mxu0 0.0
    %1522 = vmatpush2.xpose.msra.mxu0 0.0
    %1523 = vmatprep.subr.mxu0 0.0
    %1524 = vmatpush2.xpose.msra.mxu0 0.0
    %1525 = vmatprep.subr.mxu0 0.0
    %1526 = vmatpush2.xpose.msra.mxu0 0.0
    %1527 = vmatprep.subr.mxu0 0.0
    %1528 = vmatpush2.xpose.msra.mxu0 0.0
    %1529 = vmatprep.subr.mxu0 0.0
    %1530 = vmatpush2.xpose.msra.mxu0 0.0
    %1531 = vmatprep.subr.mxu0 0.0
    %1532 = vmatpush2.xpose.msra.mxu0 0.0
    %1533 = vmatprep.subr.mxu0 0.0
    %1534 = vmatpush2.xpose.msra.mxu0 0.0
    %1535 = vmatprep.subr.mxu0 0.0
    %1536 = vmatpush2.xpose.msra.mxu0 0.0
    %1537 = vmatprep.subr.mxu0 0.0
    %1538 = vmatpush2.xpose.msra.mxu0 0.0
    %1539 = vmatprep.subr.mxu0 0.0
    %1540 = vmatpush2.xpose.msra.mxu0 0.0
    %1541 = vmatprep.subr.mxu0 0.0
    %1542 = vmatpush2.xpose.msra.mxu0 0.0
    %1543 = vmatprep.subr.mxu0 0.0
    %1544 = vmatpush2.xpose.msra.mxu0 0.0
    %1545 = vmatprep.subr.mxu0 0.0
    %1546 = vmatpush2.xpose.msra.mxu0 0.0
    %1547 = vmatprep.mubr.f32.mxu0 0.0
    %1548 = vmatmul.mubr.f32.gmra.mxu0 %v1479
    %v1549 = vpop.f32.mrf.mxu0
    %v1550 = vadd.f32 0.0, %v1549
    %v1551 = vpop.f32.mrf.mxu0
    %1552 = vdwg.mxu0
    %v1553 = vsel %vm163, %v1472, -inf
    %1554 = vmax.xlane.f32.xlu0 %v1553
    %v1555 = vpop.xlane.xlu0 %1554
    %v1556 = vsel %vm163, %v1550, -inf
    %1557 = vmax.xlane.f32.xlu0 %v1556
    %v1558 = vpop.xlane.xlu0 %1557
    %v1559 = vsub.f32 %v1472, %v1555
    %v1560 = vsub.f32 %v1550, %v1558
    %v1561 = vmul.f32 %v1559, 1.442695
    %v1562 = vpow.pop %v1561
    %v1563 = vmul.f32 %v1560, 1.442695
    %v1564 = vpow.pop %v1563
    %v1565 = vsel %vm163, %v1562, 0.0
    %1566 = vadd.xlane.f32.xlu0 %v1565
    %v1567 = vpop.xlane.xlu0 %1566
    %v1568 = vsel %vm163, %v1564, 0.0
    %1569 = vadd.xlane.f32.xlu0 %v1568
    %v1570 = vpop.xlane.xlu0 %1569
    %v1571 = vrcp.pop %v1567
    %v1572 = vrcp.pop %v1570
    %v1573 = vmul.f32 %v1562, %v1571
    %v1574 = vmul.f32 %v1564, %v1572
    %1575 = vrot.lane.b32.xlu0 %v154, 40
    %v1576 = vpop.permute.xlu0 %1575
    %v1579 = vsel %vm163, %v1573, 0
    %1581 = vmatprep.subr.mxu0 0.0
    %1582 = vmatpush1.msra.mxu0 0.0
    %1583 = vmatprep.subr.mxu0 0.0
    %1584 = vmatpush1.msra.mxu0 0.0
    %1585 = vmatprep.subr.mxu0 0.0
    %1586 = vmatpush1.msra.mxu0 0.0
    %1587 = vmatprep.subr.mxu0 0.0
    %1588 = vmatpush1.msra.mxu0 0.0
    %1589 = vmatprep.subr.mxu0 0.0
    %1590 = vmatpush1.msra.mxu0 0.0
    %1591 = vmatprep.subr.mxu0 0.0
    %1592 = vmatpush1.msra.mxu0 0.0
    %1593 = vmatprep.subr.mxu0 0.0
    %1594 = vmatpush1.msra.mxu0 0.0
    %1595 = vmatprep.subr.mxu0 0.0
    %1596 = vmatpush1.msra.mxu0 0.0
    %1597 = vmatprep.subr.mxu0 0.0
    %1598 = vmatpush1.msra.mxu0 0.0
    %1599 = vmatprep.subr.mxu0 0.0
    %1600 = vmatpush1.msra.mxu0 0.0
    %1601 = vmatprep.subr.mxu0 0.0
    %1602 = vmatpush1.msra.mxu0 0.0
    %1603 = vmatprep.subr.mxu0 0.0
    %1604 = vmatpush1.msra.mxu0 0.0
    %1605 = vmatprep.subr.mxu0 0.0
    %1606 = vmatpush1.msra.mxu0 0.0
    %1607 = vmatprep.subr.mxu0 0.0
    %1608 = vmatpush1.msra.mxu0 0.0
    %1609 = vmatprep.subr.mxu0 0.0
    %1610 = vmatpush1.msra.mxu0 0.0
    %1611 = vmatprep.subr.mxu0 0.0
    %1612 = vmatpush1.msra.mxu0 %v1576
    %1613 = vmatprep.subr.mxu0 0.0
    %1614 = vmatpush2.msra.mxu0 0.0
    %1615 = vmatprep.subr.mxu0 0.0
    %1616 = vmatpush2.msra.mxu0 0.0
    %1617 = vmatprep.subr.mxu0 0.0
    %1618 = vmatpush2.msra.mxu0 0.0
    %1619 = vmatprep.subr.mxu0 0.0
    %1620 = vmatpush2.msra.mxu0 0.0
    %1621 = vmatprep.subr.mxu0 0.0
    %1622 = vmatpush2.msra.mxu0 0.0
    %1623 = vmatprep.subr.mxu0 0.0
    %1624 = vmatpush2.msra.mxu0 0.0
    %1625 = vmatprep.subr.mxu0 0.0
    %1626 = vmatpush2.msra.mxu0 0.0
    %1627 = vmatprep.subr.mxu0 0.0
    %1628 = vmatpush2.msra.mxu0 0.0
    %1629 = vmatprep.subr.mxu0 0.0
    %1630 = vmatpush2.msra.mxu0 0.0
    %1631 = vmatprep.subr.mxu0 0.0
    %1632 = vmatpush2.msra.mxu0 0.0
    %1633 = vmatprep.subr.mxu0 0.0
    %1634 = vmatpush2.msra.mxu0 0.0
    %1635 = vmatprep.subr.mxu0 0.0
    %1636 = vmatpush2.msra.mxu0 0.0
    %1637 = vmatprep.subr.mxu0 0.0
    %1638 = vmatpush2.msra.mxu0 0.0
    %1639 = vmatprep.subr.mxu0 0.0
    %1640 = vmatpush2.msra.mxu0 0.0
    %1641 = vmatprep.subr.mxu0 0.0
    %1642 = vmatpush2.msra.mxu0 0.0
    %1643 = vmatprep.subr.mxu0 0.0
    %1644 = vmatpush2.msra.mxu0 0.0
    %1645 = vmatprep.mubr.f32.mxu0 0.0
    %1646 = vmatmul.mubr.f32.gmra.mxu0 %v1579
    %v1647 = vpop.f32.mrf.mxu0
    %v1648 = vadd.f32 0.0, %v1647
    %v1649 = vpop.f32.mrf.mxu0
    %1650 = vdwg.mxu0
    %1651 = vrot.lane.b32.xlu0 %v157, 40
    %v1652 = vpop.permute.xlu0 %1651
    %v1655 = vsel %vm163, %v1574, 0
    %1657 = vmatprep.subr.mxu0 0.0
    %1658 = vmatpush1.msra.mxu0 0.0
    %1659 = vmatprep.subr.mxu0 0.0
    %1660 = vmatpush1.msra.mxu0 0.0
    %1661 = vmatprep.subr.mxu0 0.0
    %1662 = vmatpush1.msra.mxu0 0.0
    %1663 = vmatprep.subr.mxu0 0.0
    %1664 = vmatpush1.msra.mxu0 0.0
    %1665 = vmatprep.subr.mxu0 0.0
    %1666 = vmatpush1.msra.mxu0 0.0
    %1667 = vmatprep.subr.mxu0 0.0
    %1668 = vmatpush1.msra.mxu0 0.0
    %1669 = vmatprep.subr.mxu0 0.0
    %1670 = vmatpush1.msra.mxu0 0.0
    %1671 = vmatprep.subr.mxu0 0.0
    %1672 = vmatpush1.msra.mxu0 0.0
    %1673 = vmatprep.subr.mxu0 0.0
    %1674 = vmatpush1.msra.mxu0 0.0
    %1675 = vmatprep.subr.mxu0 0.0
    %1676 = vmatpush1.msra.mxu0 0.0
    %1677 = vmatprep.subr.mxu0 0.0
    %1678 = vmatpush1.msra.mxu0 0.0
    %1679 = vmatprep.subr.mxu0 0.0
    %1680 = vmatpush1.msra.mxu0 0.0
    %1681 = vmatprep.subr.mxu0 0.0
    %1682 = vmatpush1.msra.mxu0 0.0
    %1683 = vmatprep.subr.mxu0 0.0
    %1684 = vmatpush1.msra.mxu0 0.0
    %1685 = vmatprep.subr.mxu0 0.0
    %1686 = vmatpush1.msra.mxu0 0.0
    %1687 = vmatprep.subr.mxu0 0.0
    %1688 = vmatpush1.msra.mxu0 %v1652
    %1689 = vmatprep.subr.mxu0 0.0
    %1690 = vmatpush2.msra.mxu0 0.0
    %1691 = vmatprep.subr.mxu0 0.0
    %1692 = vmatpush2.msra.mxu0 0.0
    %1693 = vmatprep.subr.mxu0 0.0
    %1694 = vmatpush2.msra.mxu0 0.0
    %1695 = vmatprep.subr.mxu0 0.0
    %1696 = vmatpush2.msra.mxu0 0.0
    %1697 = vmatprep.subr.mxu0 0.0
    %1698 = vmatpush2.msra.mxu0 0.0
    %1699 = vmatprep.subr.mxu0 0.0
    %1700 = vmatpush2.msra.mxu0 0.0
    %1701 = vmatprep.subr.mxu0 0.0
    %1702 = vmatpush2.msra.mxu0 0.0
    %1703 = vmatprep.subr.mxu0 0.0
    %1704 = vmatpush2.msra.mxu0 0.0
    %1705 = vmatprep.subr.mxu0 0.0
    %1706 = vmatpush2.msra.mxu0 0.0
    %1707 = vmatprep.subr.mxu0 0.0
    %1708 = vmatpush2.msra.mxu0 0.0
    %1709 = vmatprep.subr.mxu0 0.0
    %1710 = vmatpush2.msra.mxu0 0.0
    %1711 = vmatprep.subr.mxu0 0.0
    %1712 = vmatpush2.msra.mxu0 0.0
    %1713 = vmatprep.subr.mxu0 0.0
    %1714 = vmatpush2.msra.mxu0 0.0
    %1715 = vmatprep.subr.mxu0 0.0
    %1716 = vmatpush2.msra.mxu0 0.0
    %1717 = vmatprep.subr.mxu0 0.0
    %1718 = vmatpush2.msra.mxu0 0.0
    %1719 = vmatprep.subr.mxu0 0.0
    %1720 = vmatpush2.msra.mxu0 0.0
    %1721 = vmatprep.mubr.f32.mxu0 0.0
    %1722 = vmatmul.mubr.f32.gmra.mxu0 %v1655
    %v1723 = vpop.f32.mrf.mxu0
    %v1724 = vadd.f32 0.0, %v1723
    %v1725 = vpop.f32.mrf.mxu0
    %1726 = vdwg.mxu0
    %v1727 = vld [vmem:[#allocation7 + $0x18] sm:$0xff]
    %v1729 = vsel %vm163, %v1648, 0
    %v1732 = vsel %vm163, %v1724, 0
    %1734 = vmatprep.subr.mxu0 0.0
    %1735 = vmatpush1.msra.mxu0 0.0
    %1736 = vmatprep.subr.mxu0 0.0
    %1737 = vmatpush1.msra.mxu0 0.0
    %1738 = vmatprep.subr.mxu0 0.0
    %1739 = vmatpush1.msra.mxu0 0.0
    %1740 = vmatprep.subr.mxu0 0.0
    %1741 = vmatpush1.msra.mxu0 0.0
    %1742 = vmatprep.subr.mxu0 0.0
    %1743 = vmatpush1.msra.mxu0 0.0
    %1744 = vmatprep.subr.mxu0 0.0
    %1745 = vmatpush1.msra.mxu0 0.0
    %1746 = vmatprep.subr.mxu0 0.0
    %1747 = vmatpush1.msra.mxu0 0.0
    %1748 = vmatprep.subr.mxu0 0.0
    %1749 = vmatpush1.msra.mxu0 0.0
    %1750 = vmatprep.subr.mxu0 0.0
    %1751 = vmatpush1.msra.mxu0 0.0
    %1752 = vmatprep.subr.mxu0 0.0
    %1753 = vmatpush1.msra.mxu0 0.0
    %1754 = vmatprep.subr.mxu0 0.0
    %1755 = vmatpush1.msra.mxu0 0.0
    %1756 = vmatprep.subr.mxu0 0.0
    %1757 = vmatpush1.msra.mxu0 0.0
    %1758 = vmatprep.subr.mxu0 0.0
    %1759 = vmatpush1.msra.mxu0 0.0
    %1760 = vmatprep.subr.mxu0 0.0
    %1761 = vmatpush1.msra.mxu0 0.0
    %1762 = vmatprep.subr.mxu0 0.0
    %1763 = vmatpush1.msra.mxu0 0.0
    %1764 = vmatprep.subr.mxu0 0.0
    %1765 = vmatpush1.msra.mxu0 %v1727
    %1766 = vmatprep.subr.mxu0 0.0
    %1767 = vmatpush2.msra.mxu0 0.0
    %1768 = vmatprep.subr.mxu0 0.0
    %1769 = vmatpush2.msra.mxu0 0.0
    %1770 = vmatprep.subr.mxu0 0.0
    %1771 = vmatpush2.msra.mxu0 0.0
    %1772 = vmatprep.subr.mxu0 0.0
    %1773 = vmatpush2.msra.mxu0 0.0
    %1774 = vmatprep.subr.mxu0 0.0
    %1775 = vmatpush2.msra.mxu0 0.0
    %1776 = vmatprep.subr.mxu0 0.0
    %1777 = vmatpush2.msra.mxu0 0.0
    %1778 = vmatprep.subr.mxu0 0.0
    %1779 = vmatpush2.msra.mxu0 0.0
    %1780 = vmatprep.subr.mxu0 0.0
    %1781 = vmatpush2.msra.mxu0 0.0
    %1782 = vmatprep.subr.mxu0 0.0
    %1783 = vmatpush2.msra.mxu0 0.0
    %1784 = vmatprep.subr.mxu0 0.0
    %1785 = vmatpush2.msra.mxu0 0.0
    %1786 = vmatprep.subr.mxu0 0.0
    %1787 = vmatpush2.msra.mxu0 0.0
    %1788 = vmatprep.subr.mxu0 0.0
    %1789 = vmatpush2.msra.mxu0 0.0
    %1790 = vmatprep.subr.mxu0 0.0
    %1791 = vmatpush2.msra.mxu0 0.0
    %1792 = vmatprep.subr.mxu0 0.0
    %1793 = vmatpush2.msra.mxu0 0.0
    %1794 = vmatprep.subr.mxu0 0.0
    %1795 = vmatpush2.msra.mxu0 0.0
    %1796 = vmatprep.subr.mxu0 0.0
    %1797 = vmatpush2.msra.mxu0 0.0
    %1798 = vmatprep.mubr.f32.mxu0 0.0
    %1799 = vmatmul.mubr.f32.gmra.mxu0 %v1729
    %v1800 = vpop.f32.mrf.mxu0
    %v1801 = vadd.f32 0.0, %v1800
    %v1802 = vpop.f32.mrf.mxu0
    %1803 = vmatprep.mubr.f32.mxu0 0.0
    %1804 = vmatmul.mubr.f32.gmra.mxu0 %v1732
    %v1805 = vpop.f32.mrf.mxu0
    %v1806 = vadd.f32 0.0, %v1805
    %v1807 = vpop.f32.mrf.mxu0
    %1808 = vdwg.mxu0
    %v1809 = vadd.f32 %v1395, %v1801
    %v1810 = vadd.f32 %v1396, %v1806
    %v1811 = vld [vmem:[%s3] sm:$0x1]
    %v1813 = vlaneseq
    %v1814 = vshrl.u32 %v1813, 7
    %v1815 = vsub.s32 0, %v1814
    %v1816 = vrot.slane %v1811, %v1815
    %v1818 = vadd.f32 %v1809, %v1816
    %v1819 = vadd.f32 %v1810, %v1816
    %vm1820 = vcmask 261120
    %1821 = vst.msk [vmem:[#allocation8] sm:$0xff] %vm1820, %v1818
    %1822 = vst.msk [vmem:[#allocation8 + $0x8] sm:$0xff] %vm1820, %v1819
    // Predicated region
    $region30: #{tpu_custom_call.1} parent=1 // pred_check
      _
    $region31: #{tpu_custom_call.1} parent=1 // pred_check_branch
      %1824 = sbr.rel (0) target = $region33
    $region32: #{tpu_custom_call.1} parent=1 // pred_region
      %s1826 = ssub.s32 256, 256
      %1827 = vsyncadd [#allocation4], %s1826
      %s1828 = sshll.u32 [#allocation8], 4
      %s1829 = int_to_ptr.vmem [resolvable:$true] %s1828
      %1834 = dma.vmem_to_hbm [thread:$0]  %s1829, 256, %s4, [#allocation4], 128, 128, 8
    $region33: #{tpu_custom_call.1} parent=1 // pred_fallthru
      _
    // Predicated region
    $region34: #{tpu_custom_call.1} parent=1 // pred_check
      _
    $region35: #{tpu_custom_call.1} parent=1 // pred_check_branch
      %1836 = sbr.rel (0) target = $region37
    $region36: #{tpu_custom_call.1} parent=1 // pred_region
      %1837 = dma.done [#allocation4], 256
    $region37: #{tpu_custom_call.1} parent=1 // pred_fallthru
      _
    %1838 = vsyncpa [#allocation3], 1
    %1839 = vsyncpa [#allocation6], 1
    %1840 = vsyncpa [#allocation4], 1

</llo_original>
